<compile_context>
chip_gen: v6e
topology: v6e:2x2x1
jax: 0.10.0
libtpu: 0.0.40
codegen_flags: <defaults>
</compile_context>

<pallas_src>
import functools

import jax
import jax.numpy as jnp
from jax.experimental import pallas as pl
from jax.experimental.pallas import tpu as pltpu


# ----------------------------------------------------------------------------
# Fused kernel: conv1 (1 matmul) -> bias -> CELU -> in-register replication pad
#               -> conv2 im2col (K2 = 9*OC1) -> conv2 (1 matmul) -> bias
# One grid step handles `nb` whole images (M = nb*H*W matmul rows).
# ----------------------------------------------------------------------------
def _unet_conv_block_kernel(p1_ref, w1_ref, b1_ref, w2_ref, b2_ref, o_ref,
                            *, nb, h, w, oc1):
    # ---- conv1: single MXU pass over the host-side im2col patches ----------
    # (M, K1p) bf16 @ (K1p, OC1) bf16 -> f32
    h1 = jnp.dot(p1_ref[...], w1_ref[...], preferred_element_type=jnp.float32)
    h1 = h1 + b1_ref[...]                                    # (M, OC1) f32
    # CELU(alpha=1): x if x > 0 else exp(x) - 1
    h1 = jnp.where(h1 > 0, h1, jnp.exp(h1) - 1.0)
    # bf16 operand for the second matmul (f32 accumulation kept below).
    h1 = h1.astype(jnp.bfloat16).reshape(nb, h, w, oc1)

    # ---- ReplicationPad2d(1) of h1 from in-register values (no scratch RAW)
    h1p = jnp.concatenate([h1[:, :1], h1, h1[:, h - 1:]], axis=1)       # rows
    h1p = jnp.concatenate([h1p[:, :, :1], h1p, h1p[:, :, w - 1:]], axis=2)

    # ---- conv2 im2col: K2 = 9*OC1 (un-padded contraction), single matmul ---
    p2 = jnp.concatenate(
        [h1p[:, di:di + h, dj:dj + w, :]
         for di in range(3) for dj in range(3)], axis=-1)    # (nb, h, w, 9*OC1)
    p2 = p2.reshape(nb * h * w, 9 * oc1)

    out = jnp.dot(p2, w2_ref[...], preferred_element_type=jnp.float32)
    o_ref[...] = (out + b2_ref[...]).astype(o_ref.dtype)     # (M, OC2) store


# ----------------------------------------------------------------------------
# Wrapper: NCHW in / NCHW out.  Host side does the cheap layout plumbing:
# input replication-pad + im2col, weight reshaping, K1 lane padding, bf16 cast.
# ----------------------------------------------------------------------------
def unet_conv_block(x, w1, b1, w2, b2, *, batch_tile=None):
    """x: (N, Cin, H, W); w1: (OC1, Cin, 3, 3); w2: (OC2, OC1, 3, 3)."""
    N, Cin, H, W = x.shape
    OC1, OC2 = w1.shape[0], w2.shape[0]
    assert w1.shape == (OC1, Cin, 3, 3) and w2.shape == (OC2, OC1, 3, 3)
    assert b1.shape == (OC1,) and b2.shape == (OC2,)
    if batch_tile is None:
        batch_tile = N                    # fold the whole batch into one M
    assert N % batch_tile == 0

    K1, K2 = 9 * Cin, 9 * OC1
    K1p = ((K1 + 127) // 128) * 128       # conv1 contraction -> full-lane pass

    # --- host-side prep (tiny XLA ops) ---------------------------------------
    x_nhwc = jnp.transpose(x, (0, 2, 3, 1)).astype(jnp.float32)
    xp = jnp.pad(x_nhwc, ((0, 0), (1, 1), (1, 1), (0, 0)), mode="edge")
    # im2col, column index k = (kh*3 + kw)*Cin + c  (tap-major, channel inner)
    p1 = jnp.concatenate(
        [xp[:, di:di + H, dj:dj + W, :]
         for di in range(3) for dj in range(3)], axis=-1)        # (N,H,W,9Cin)
    p1 = p1.reshape(N * H * W, K1)
    p1 = jnp.pad(p1, ((0, 0), (0, K1p - K1))).astype(jnp.bfloat16)

    # weight matrices with matching K ordering; conv1 K zero-padded to K1p,
    # conv2 K kept at exactly 9*OC1 (no 128-padding of the contraction).
    w1m = jnp.transpose(w1, (2, 3, 1, 0)).reshape(K1, OC1)
    w1m = jnp.pad(w1m, ((0, K1p - K1), (0, 0))).astype(jnp.bfloat16)
    w2m = jnp.transpose(w2, (2, 3, 1, 0)).reshape(K2, OC2).astype(jnp.bfloat16)
    b1r = b1.reshape(1, OC1).astype(jnp.float32)
    b2r = b2.reshape(1, OC2).astype(jnp.float32)

    M, Mt = N * H * W, batch_tile * H * W
    kernel = functools.partial(_unet_conv_block_kernel,
                               nb=batch_tile, h=H, w=W, oc1=OC1)

    out = pl.pallas_call(
        kernel,
        out_shape=jax.ShapeDtypeStruct((M, OC2), jnp.float32),
        grid_spec=pltpu.PrefetchScalarGridSpec(
            num_scalar_prefetch=0,
            grid=(N // batch_tile,),                 # 1 step at the test size
            in_specs=[
                pl.BlockSpec((Mt, K1p), lambda g: (g, 0)),     # im2col patches
                pl.BlockSpec((K1p, OC1), lambda g: (0, 0)),    # resident w1
                pl.BlockSpec((1, OC1), lambda g: (0, 0)),      # resident b1
                pl.BlockSpec((K2, OC2), lambda g: (0, 0)),     # resident w2
                pl.BlockSpec((1, OC2), lambda g: (0, 0)),      # resident b2
            ],
            out_specs=pl.BlockSpec((Mt, OC2), lambda g: (g, 0)),
        ),
        compiler_params=pltpu.CompilerParams(
            dimension_semantics=("parallel",)),      # usable by v7x's 2 TCs
    )(p1, w1m, b1r, w2m, b2r)

    out = out.reshape(N, H, W, OC2)
    return jnp.transpose(out, (0, 3, 1, 2))          # back to NCHW


# ----------------------------------------------------------------------------
# Pure-JAX reference (all-f32, HIGHEST precision).
# ----------------------------------------------------------------------------
def reference(x, w1, b1, w2, b2):
    x_nhwc = jnp.transpose(x, (0, 2, 3, 1)).astype(jnp.float32)

    def conv(xx, w, b, act):
        xpad = jnp.pad(xx, ((0, 0), (1, 1), (1, 1), (0, 0)), mode="edge")
        whwio = jnp.transpose(w, (2, 3, 1, 0)).astype(jnp.float32)
        y = jax.lax.conv_general_dilated(
            xpad, whwio, (1, 1), "VALID",
            dimension_numbers=("NHWC", "HWIO", "NHWC"),
            precision=jax.lax.Precision.HIGHEST) + b
        if act == "celu":
            y = jnp.where(y > 0, y, jnp.exp(y) - 1.0)
        return y

    h1 = conv(x_nhwc, w1, b1, "celu")
    h2 = conv(h1, w2, b2, "none")
    return jnp.transpose(h2, (0, 3, 1, 2))


# ----------------------------------------------------------------------------
if __name__ == "__main__":
    key = jax.random.PRNGKey(0)
    k1, k2, k3, k4, k5 = jax.random.split(key, 5)

    # UNetConvBlock(in_size=4, out_size=(8, 8), kersize=3, padding=0, norm='no')
    N, Cin, H, W = 2, 4, 16, 16
    OC1, OC2 = 8, 8

    x = jax.random.normal(k1, (N, Cin, H, W), jnp.float32)
    w1 = 0.1 * jax.random.normal(k2, (OC1, Cin, 3, 3), jnp.float32)
    b1 = 0.1 * jax.random.normal(k3, (OC1,), jnp.float32)
    w2 = 0.1 * jax.random.normal(k4, (OC2, OC1, 3, 3), jnp.float32)
    b2 = 0.1 * jax.random.normal(k5, (OC2,), jnp.float32)

    out = jax.block_until_ready(unet_conv_block(x, w1, b1, w2, b2))
    assert out.shape == (N, OC2, H, W), out.shape

    ref = jax.block_until_ready(reference(x, w1, b1, w2, b2))
    max_err = float(jnp.max(jnp.abs(out - ref)))
    # Kernel uses bf16 matmul operands with f32 accumulation; reference is
    # all-f32 HIGHEST, so allow bf16-operand-level tolerance.
    assert jnp.allclose(out, ref, atol=3e-2, rtol=3e-2), max_err

    print("KERNEL_OK")
</pallas_src>

<mosaic_0001>
module attributes {stable_mosaic.version = 11 : i64} {
  func.func @_unet_conv_block_kernel(%arg0: i32, %arg1: memref<512x128xbf16, #tpu.memory_space<vmem>>, %arg2: memref<128x8xbf16, #tpu.memory_space<vmem>>, %arg3: memref<1x8xf32, #tpu.memory_space<vmem>>, %arg4: memref<72x8xbf16, #tpu.memory_space<vmem>>, %arg5: memref<1x8xf32, #tpu.memory_space<vmem>>, %arg6: memref<512x8xf32, #tpu.memory_space<vmem>>) attributes {dimension_semantics = [#tpu.dimension_semantics<parallel>], iteration_bounds = array<i64: 1>, scalar_prefetch = 0 : i64, scratch_operands = 0 : i64, tpu.core_type = #tpu.core_type<tc>, window_params = [{transform_indices = @transform_0, window_bounds = array<i64: 512, 128>}, {pipeline_mode = #tpu.pipeline_mode<synchronous>, transform_indices = @transform_1, window_bounds = array<i64: 128, 8>}, {pipeline_mode = #tpu.pipeline_mode<synchronous>, transform_indices = @transform_2, window_bounds = array<i64: 1, 8>}, {pipeline_mode = #tpu.pipeline_mode<synchronous>, transform_indices = @transform_3, window_bounds = array<i64: 72, 8>}, {pipeline_mode = #tpu.pipeline_mode<synchronous>, transform_indices = @transform_4, window_bounds = array<i64: 1, 8>}, {transform_indices = @transform_5, window_bounds = array<i64: 512, 8>}]} {
    %c0 = arith.constant 0 : index
    %c0_0 = arith.constant 0 : index
    %0 = vector.load %arg1[%c0, %c0_0] : memref<512x128xbf16, #tpu.memory_space<vmem>>, vector<512x128xbf16>
    %c0_1 = arith.constant 0 : index
    %c0_2 = arith.constant 0 : index
    %1 = vector.load %arg2[%c0_1, %c0_2] : memref<128x8xbf16, #tpu.memory_space<vmem>>, vector<128x8xbf16>
    %cst = arith.constant dense<0.000000e+00> : vector<512x8xf32>
    %2 = tpu.matmul %0, %1, %cst {dimension_numbers = #tpu.dot_dimension_numbers<[1], [0], [0], [1], [0, 0, 1, 1], [], []>} : vector<512x128xbf16>, vector<128x8xbf16>, vector<512x8xf32> -> vector<512x8xf32>
    %c0_3 = arith.constant 0 : index
    %c0_4 = arith.constant 0 : index
    %3 = vector.load %arg3[%c0_3, %c0_4] : memref<1x8xf32, #tpu.memory_space<vmem>>, vector<1x8xf32>
    %4 = vector.broadcast %3 : vector<1x8xf32> to vector<512x8xf32>
    %5 = arith.addf %2, %4 : vector<512x8xf32>
    %cst_5 = arith.constant 0.000000e+00 : f32
    %6 = vector.broadcast %cst_5 : f32 to vector<512x8xf32>
    %7 = arith.cmpf ogt, %5, %6 : vector<512x8xf32>
    %8 = math.exp %5 : vector<512x8xf32>
    %cst_6 = arith.constant 1.000000e+00 : f32
    %9 = vector.broadcast %cst_6 : f32 to vector<512x8xf32>
    %10 = arith.subf %8, %9 : vector<512x8xf32>
    %11 = arith.select %7, %5, %10 : vector<512x8xi1>, vector<512x8xf32>
    %12 = arith.truncf %11 : vector<512x8xf32> to vector<512x8xbf16>
    %13 = vector.shape_cast %12 : vector<512x8xbf16> to vector<2x16x16x8xbf16>
    %14 = vector.extract_strided_slice %13 {offsets = [0, 0, 0, 0], sizes = [2, 1, 16, 8], strides = [1, 1, 1, 1]} : vector<2x16x16x8xbf16> to vector<2x1x16x8xbf16>
    %15 = vector.extract_strided_slice %13 {offsets = [0, 15, 0, 0], sizes = [2, 1, 16, 8], strides = [1, 1, 1, 1]} : vector<2x16x16x8xbf16> to vector<2x1x16x8xbf16>
    %16 = tpu.concatenate %14, %13, %15 in 1 : vector<2x1x16x8xbf16>, vector<2x16x16x8xbf16>, vector<2x1x16x8xbf16> -> vector<2x18x16x8xbf16>
    %17 = vector.extract_strided_slice %16 {offsets = [0, 0, 0, 0], sizes = [2, 18, 1, 8], strides = [1, 1, 1, 1]} : vector<2x18x16x8xbf16> to vector<2x18x1x8xbf16>
    %18 = vector.extract_strided_slice %16 {offsets = [0, 0, 15, 0], sizes = [2, 18, 1, 8], strides = [1, 1, 1, 1]} : vector<2x18x16x8xbf16> to vector<2x18x1x8xbf16>
    %19 = tpu.concatenate %17, %16, %18 in 2 : vector<2x18x1x8xbf16>, vector<2x18x16x8xbf16>, vector<2x18x1x8xbf16> -> vector<2x18x18x8xbf16>
    %20 = vector.extract_strided_slice %19 {offsets = [0, 0, 0, 0], sizes = [2, 16, 16, 8], strides = [1, 1, 1, 1]} : vector<2x18x18x8xbf16> to vector<2x16x16x8xbf16>
    %21 = vector.extract_strided_slice %19 {offsets = [0, 0, 1, 0], sizes = [2, 16, 16, 8], strides = [1, 1, 1, 1]} : vector<2x18x18x8xbf16> to vector<2x16x16x8xbf16>
    %22 = vector.extract_strided_slice %19 {offsets = [0, 0, 2, 0], sizes = [2, 16, 16, 8], strides = [1, 1, 1, 1]} : vector<2x18x18x8xbf16> to vector<2x16x16x8xbf16>
    %23 = vector.extract_strided_slice %19 {offsets = [0, 1, 0, 0], sizes = [2, 16, 16, 8], strides = [1, 1, 1, 1]} : vector<2x18x18x8xbf16> to vector<2x16x16x8xbf16>
    %24 = vector.extract_strided_slice %19 {offsets = [0, 1, 1, 0], sizes = [2, 16, 16, 8], strides = [1, 1, 1, 1]} : vector<2x18x18x8xbf16> to vector<2x16x16x8xbf16>
    %25 = vector.extract_strided_slice %19 {offsets = [0, 1, 2, 0], sizes = [2, 16, 16, 8], strides = [1, 1, 1, 1]} : vector<2x18x18x8xbf16> to vector<2x16x16x8xbf16>
    %26 = vector.extract_strided_slice %19 {offsets = [0, 2, 0, 0], sizes = [2, 16, 16, 8], strides = [1, 1, 1, 1]} : vector<2x18x18x8xbf16> to vector<2x16x16x8xbf16>
    %27 = vector.extract_strided_slice %19 {offsets = [0, 2, 1, 0], sizes = [2, 16, 16, 8], strides = [1, 1, 1, 1]} : vector<2x18x18x8xbf16> to vector<2x16x16x8xbf16>
    %28 = vector.extract_strided_slice %19 {offsets = [0, 2, 2, 0], sizes = [2, 16, 16, 8], strides = [1, 1, 1, 1]} : vector<2x18x18x8xbf16> to vector<2x16x16x8xbf16>
    %29 = tpu.concatenate %20, %21, %22, %23, %24, %25, %26, %27, %28 in 3 : vector<2x16x16x8xbf16>, vector<2x16x16x8xbf16>, vector<2x16x16x8xbf16>, vector<2x16x16x8xbf16>, vector<2x16x16x8xbf16>, vector<2x16x16x8xbf16>, vector<2x16x16x8xbf16>, vector<2x16x16x8xbf16>, vector<2x16x16x8xbf16> -> vector<2x16x16x72xbf16>
    %30 = vector.shape_cast %29 : vector<2x16x16x72xbf16> to vector<512x72xbf16>
    %c0_7 = arith.constant 0 : index
    %c0_8 = arith.constant 0 : index
    %31 = vector.load %arg4[%c0_7, %c0_8] : memref<72x8xbf16, #tpu.memory_space<vmem>>, vector<72x8xbf16>
    %cst_9 = arith.constant dense<0.000000e+00> : vector<512x8xf32>
    %32 = tpu.matmul %30, %31, %cst_9 {dimension_numbers = #tpu.dot_dimension_numbers<[1], [0], [0], [1], [0, 0, 1, 1], [], []>} : vector<512x72xbf16>, vector<72x8xbf16>, vector<512x8xf32> -> vector<512x8xf32>
    %c0_10 = arith.constant 0 : index
    %c0_11 = arith.constant 0 : index
    %33 = vector.load %arg5[%c0_10, %c0_11] : memref<1x8xf32, #tpu.memory_space<vmem>>, vector<1x8xf32>
    %34 = vector.broadcast %33 : vector<1x8xf32> to vector<512x8xf32>
    %35 = arith.addf %32, %34 : vector<512x8xf32>
    %c0_12 = arith.constant 0 : index
    %c0_13 = arith.constant 0 : index
    %36 = vector.load %arg6[%c0_12, %c0_13] : memref<512x8xf32, #tpu.memory_space<vmem>>, vector<512x8xf32>
    tpu.vector_store %arg6[%c0_12, %c0_13], %35 {strides = array<i32>} : memref<512x8xf32, #tpu.memory_space<vmem>>, vector<512x8xf32>,
    return
  }
  func.func @transform_0(%arg0: i32) -> (i32, i32) {
    %c0_i32 = arith.constant 0 : i32
    %c0_i32_0 = arith.constant 0 : i32
    return %arg0, %c0_i32 : i32, i32
  }
  func.func @transform_1(%arg0: i32) -> (i32, i32) {
    %c0_i32 = arith.constant 0 : i32
    %c0_i32_0 = arith.constant 0 : i32
    %c0_i32_1 = arith.constant 0 : i32
    return %c0_i32, %c0_i32_0 : i32, i32
  }
  func.func @transform_2(%arg0: i32) -> (i32, i32) {
    %c0_i32 = arith.constant 0 : i32
    %c0_i32_0 = arith.constant 0 : i32
    %c0_i32_1 = arith.constant 0 : i32
    return %c0_i32, %c0_i32_0 : i32, i32
  }
  func.func @transform_3(%arg0: i32) -> (i32, i32) {
    %c0_i32 = arith.constant 0 : i32
    %c0_i32_0 = arith.constant 0 : i32
    %c0_i32_1 = arith.constant 0 : i32
    return %c0_i32, %c0_i32_0 : i32, i32
  }
  func.func @transform_4(%arg0: i32) -> (i32, i32) {
    %c0_i32 = arith.constant 0 : i32
    %c0_i32_0 = arith.constant 0 : i32
    %c0_i32_1 = arith.constant 0 : i32
    return %c0_i32, %c0_i32_0 : i32, i32
  }
  func.func @transform_5(%arg0: i32) -> (i32, i32) {
    %c0_i32 = arith.constant 0 : i32
    %c0_i32_0 = arith.constant 0 : i32
    return %arg0, %c0_i32 : i32, i32
  }
}

</mosaic_0001>

<llo_original>
// kernel: tpu_custom_call.1
$region0: #{tpu_custom_call.1}
  #allocation0 [shape = 'u32[]', space=smem, size = 0x4, offset = 0x4, fixed_abs, tag = 'smem constant byte address 0x4 - core index']
  #allocation1 [shape = 'u32[144,128]{1,0:T(1,128)}', space=vmem, size = 0x12000, scoped, tag = 'internal scratch']
  %s0 = inlined_call_operand.hbm [shape: bf16[512,128], index: 0, kind: input, shape index: {}]
  %s1 = inlined_call_operand.vmem [shape: bf16[128,8], index: 1, kind: input, shape index: {}]
  %s2 = inlined_call_operand.vmem [shape: f32[1,8], index: 2, kind: input, shape index: {}]
  %s3 = inlined_call_operand.vmem [shape: bf16[72,8], index: 3, kind: input, shape index: {}]
  %s4 = inlined_call_operand.vmem [shape: f32[1,8], index: 4, kind: input, shape index: {}]
  %s5 = inlined_call_operand.vmem [shape: f32[512,8], index: 5, kind: output, shape index: {}]
  %s6 = sld [smem:[#allocation0]]
  $region34: #{tpu_custom_call.1} parent=0
    _
  %s8 = ssub.s32 1, %s6
  %s9 = scalar_select 0, %s8, %s6
  $region1: #{tpu_custom_call.1} parent=0
    #allocation2 [shape = 'u8[131072]{0}', space=vmem, size = 0x20000, scoped, tag = 'input window, operand 0, single buffered']
    #allocation3 [shape = 's32[1]{0}', space=sflag, size = 0x4, scoped, tag = 'scoped memory for tpu_custom_call.1']
    %10 = vsyncpa [#allocation3], 0
    // Predicated region
    $region2: #{tpu_custom_call.1} parent=1 // pred_check
      _
    $region3: #{tpu_custom_call.1} parent=1 // pred_check_branch
      %12 = sbr.rel (0) target = $region5
    $region4: #{tpu_custom_call.1} parent=1 // pred_region
      %s14 = ssub.s32 4096, 4096
      %15 = vsyncadd [#allocation3], %s14
      %s16 = sshll.u32 [#allocation2], 4
      %s17 = int_to_ptr.vmem [resolvable:$true] %s16
      %22 = dma.hbm_to_vmem [thread:$0]  %s0, 4096, %s17, [#allocation3], 64, 64, 4
    $region5: #{tpu_custom_call.1} parent=1 // pred_fallthru
      _
    // Predicated region
    $region6: #{tpu_custom_call.1} parent=1 // pred_check
      _
    $region7: #{tpu_custom_call.1} parent=1 // pred_check_branch
      %24 = sbr.rel (0) target = $region9
    $region8: #{tpu_custom_call.1} parent=1 // pred_region
      _
    $region9: #{tpu_custom_call.1} parent=1 // pred_fallthru
      _
    // Predicated region
    $region10: #{tpu_custom_call.1} parent=1 // pred_check
      _
    $region11: #{tpu_custom_call.1} parent=1 // pred_check_branch
      %26 = sbr.rel (0) target = $region13
    $region12: #{tpu_custom_call.1} parent=1 // pred_region
      _
    $region13: #{tpu_custom_call.1} parent=1 // pred_fallthru
      _
    // Predicated region
    $region14: #{tpu_custom_call.1} parent=1 // pred_check
      _
    $region15: #{tpu_custom_call.1} parent=1 // pred_check_branch
      %28 = sbr.rel (0) target = $region17
    $region16: #{tpu_custom_call.1} parent=1 // pred_region
      _
    $region17: #{tpu_custom_call.1} parent=1 // pred_fallthru
      _
    // Predicated region
    $region18: #{tpu_custom_call.1} parent=1 // pred_check
      _
    $region19: #{tpu_custom_call.1} parent=1 // pred_check_branch
      %30 = sbr.rel (0) target = $region21
    $region20: #{tpu_custom_call.1} parent=1 // pred_region
      _
    $region21: #{tpu_custom_call.1} parent=1 // pred_fallthru
      _
    // Predicated region
    $region22: #{tpu_custom_call.1} parent=1 // pred_check
      _
    $region23: #{tpu_custom_call.1} parent=1 // pred_check_branch
      %32 = sbr.rel (0) target = $region25
    $region24: #{tpu_custom_call.1} parent=1 // pred_region
      %33 = dma.done [#allocation3], 4096
    $region25: #{tpu_custom_call.1} parent=1 // pred_fallthru
      _
    %v35 = vld [vmem:[#allocation2] sm:$0xf]
    %v36 = vld [vmem:[#allocation2 + $0x4] sm:$0xf]
    %v37 = vld [vmem:[#allocation2 + $0x8] sm:$0xf]
    %v38 = vld [vmem:[#allocation2 + $0xc] sm:$0xf]
    %v39 = vld [vmem:[#allocation2 + $0x10] sm:$0xf]
    %v40 = vld [vmem:[#allocation2 + $0x14] sm:$0xf]
    %v41 = vld [vmem:[#allocation2 + $0x18] sm:$0xf]
    %v42 = vld [vmem:[#allocation2 + $0x1c] sm:$0xf]
    %v43 = vld [vmem:[#allocation2 + $0x20] sm:$0xf]
    %v44 = vld [vmem:[#allocation2 + $0x24] sm:$0xf]
    %v45 = vld [vmem:[#allocation2 + $0x28] sm:$0xf]
    %v46 = vld [vmem:[#allocation2 + $0x2c] sm:$0xf]
    %v47 = vld [vmem:[#allocation2 + $0x30] sm:$0xf]
    %v48 = vld [vmem:[#allocation2 + $0x34] sm:$0xf]
    %v49 = vld [vmem:[#allocation2 + $0x38] sm:$0xf]
    %v50 = vld [vmem:[#allocation2 + $0x3c] sm:$0xf]
    %v51 = vld [vmem:[#allocation2 + $0x40] sm:$0xf]
    %v52 = vld [vmem:[#allocation2 + $0x44] sm:$0xf]
    %v53 = vld [vmem:[#allocation2 + $0x48] sm:$0xf]
    %v54 = vld [vmem:[#allocation2 + $0x4c] sm:$0xf]
    %v55 = vld [vmem:[#allocation2 + $0x50] sm:$0xf]
    %v56 = vld [vmem:[#allocation2 + $0x54] sm:$0xf]
    %v57 = vld [vmem:[#allocation2 + $0x58] sm:$0xf]
    %v58 = vld [vmem:[#allocation2 + $0x5c] sm:$0xf]
    %v59 = vld [vmem:[#allocation2 + $0x60] sm:$0xf]
    %v60 = vld [vmem:[#allocation2 + $0x64] sm:$0xf]
    %v61 = vld [vmem:[#allocation2 + $0x68] sm:$0xf]
    %v62 = vld [vmem:[#allocation2 + $0x6c] sm:$0xf]
    %v63 = vld [vmem:[#allocation2 + $0x70] sm:$0xf]
    %v64 = vld [vmem:[#allocation2 + $0x74] sm:$0xf]
    %v65 = vld [vmem:[#allocation2 + $0x78] sm:$0xf]
    %v66 = vld [vmem:[#allocation2 + $0x7c] sm:$0xf]
    %v67 = vld [vmem:[#allocation2 + $0x80] sm:$0xf]
    %v68 = vld [vmem:[#allocation2 + $0x84] sm:$0xf]
    %v69 = vld [vmem:[#allocation2 + $0x88] sm:$0xf]
    %v70 = vld [vmem:[#allocation2 + $0x8c] sm:$0xf]
    %v71 = vld [vmem:[#allocation2 + $0x90] sm:$0xf]
    %v72 = vld [vmem:[#allocation2 + $0x94] sm:$0xf]
    %v73 = vld [vmem:[#allocation2 + $0x98] sm:$0xf]
    %v74 = vld [vmem:[#allocation2 + $0x9c] sm:$0xf]
    %v75 = vld [vmem:[#allocation2 + $0xa0] sm:$0xf]
    %v76 = vld [vmem:[#allocation2 + $0xa4] sm:$0xf]
    %v77 = vld [vmem:[#allocation2 + $0xa8] sm:$0xf]
    %v78 = vld [vmem:[#allocation2 + $0xac] sm:$0xf]
    %v79 = vld [vmem:[#allocation2 + $0xb0] sm:$0xf]
    %v80 = vld [vmem:[#allocation2 + $0xb4] sm:$0xf]
    %v81 = vld [vmem:[#allocation2 + $0xb8] sm:$0xf]
    %v82 = vld [vmem:[#allocation2 + $0xbc] sm:$0xf]
    %v83 = vld [vmem:[#allocation2 + $0xc0] sm:$0xf]
    %v84 = vld [vmem:[#allocation2 + $0xc4] sm:$0xf]
    %v85 = vld [vmem:[#allocation2 + $0xc8] sm:$0xf]
    %v86 = vld [vmem:[#allocation2 + $0xcc] sm:$0xf]
    %v87 = vld [vmem:[#allocation2 + $0xd0] sm:$0xf]
    %v88 = vld [vmem:[#allocation2 + $0xd4] sm:$0xf]
    %v89 = vld [vmem:[#allocation2 + $0xd8] sm:$0xf]
    %v90 = vld [vmem:[#allocation2 + $0xdc] sm:$0xf]
    %v91 = vld [vmem:[#allocation2 + $0xe0] sm:$0xf]
    %v92 = vld [vmem:[#allocation2 + $0xe4] sm:$0xf]
    %v93 = vld [vmem:[#allocation2 + $0xe8] sm:$0xf]
    %v94 = vld [vmem:[#allocation2 + $0xec] sm:$0xf]
    %v95 = vld [vmem:[#allocation2 + $0xf0] sm:$0xf]
    %v96 = vld [vmem:[#allocation2 + $0xf4] sm:$0xf]
    %v97 = vld [vmem:[#allocation2 + $0xf8] sm:$0xf]
    %v98 = vld [vmem:[#allocation2 + $0xfc] sm:$0xf]
    %v99 = vld [vmem:[%s1] sm:$0xf]
    %v100 = vld [vmem:[%s1 + $0x4] sm:$0xf]
    %v101 = vld [vmem:[%s1 + $0x8] sm:$0xf]
    %v102 = vld [vmem:[%s1 + $0xc] sm:$0xf]
    %v103 = vld [vmem:[%s1 + $0x10] sm:$0xf]
    %v104 = vld [vmem:[%s1 + $0x14] sm:$0xf]
    %v105 = vld [vmem:[%s1 + $0x18] sm:$0xf]
    %v106 = vld [vmem:[%s1 + $0x1c] sm:$0xf]
    %v107 = vld [vmem:[%s1 + $0x20] sm:$0xf]
    %v108 = vld [vmem:[%s1 + $0x24] sm:$0xf]
    %v109 = vld [vmem:[%s1 + $0x28] sm:$0xf]
    %v110 = vld [vmem:[%s1 + $0x2c] sm:$0xf]
    %v111 = vld [vmem:[%s1 + $0x30] sm:$0xf]
    %v112 = vld [vmem:[%s1 + $0x34] sm:$0xf]
    %v113 = vld [vmem:[%s1 + $0x38] sm:$0xf]
    %v114 = vld [vmem:[%s1 + $0x3c] sm:$0xf]
    %v115 = vld [vmem:[%s2] sm:$0x1]
    %v117 = vlaneseq
    %v118 = vshrl.u32 %v117, 7
    %v119 = vsub.s32 0, %v118
    %v120 = vrot.slane %v115, %v119
    %v186 = vunpack.c.l.b16 %v35
    %v187 = vunpack.c.l.b16 %v36
    %v188 = vunpack.c.l.b16 %v37
    %v189 = vunpack.c.l.b16 %v38
    %v190 = vunpack.c.l.b16 %v39
    %v191 = vunpack.c.l.b16 %v40
    %v192 = vunpack.c.l.b16 %v41
    %v193 = vunpack.c.l.b16 %v42
    %v194 = vunpack.c.l.b16 %v43
    %v195 = vunpack.c.l.b16 %v44
    %v196 = vunpack.c.l.b16 %v45
    %v197 = vunpack.c.l.b16 %v46
    %v198 = vunpack.c.l.b16 %v47
    %v199 = vunpack.c.l.b16 %v48
    %v200 = vunpack.c.l.b16 %v49
    %v201 = vunpack.c.l.b16 %v50
    %v202 = vunpack.c.l.b16 %v51
    %v203 = vunpack.c.l.b16 %v52
    %v204 = vunpack.c.l.b16 %v53
    %v205 = vunpack.c.l.b16 %v54
    %v206 = vunpack.c.l.b16 %v55
    %v207 = vunpack.c.l.b16 %v56
    %v208 = vunpack.c.l.b16 %v57
    %v209 = vunpack.c.l.b16 %v58
    %v210 = vunpack.c.l.b16 %v59
    %v211 = vunpack.c.l.b16 %v60
    %v212 = vunpack.c.l.b16 %v61
    %v213 = vunpack.c.l.b16 %v62
    %v214 = vunpack.c.l.b16 %v63
    %v215 = vunpack.c.l.b16 %v64
    %v216 = vunpack.c.l.b16 %v65
    %v217 = vunpack.c.l.b16 %v66
    %v218 = vunpack.c.l.b16 %v67
    %v219 = vunpack.c.l.b16 %v68
    %v220 = vunpack.c.l.b16 %v69
    %v221 = vunpack.c.l.b16 %v70
    %v222 = vunpack.c.l.b16 %v71
    %v223 = vunpack.c.l.b16 %v72
    %v224 = vunpack.c.l.b16 %v73
    %v225 = vunpack.c.l.b16 %v74
    %v226 = vunpack.c.l.b16 %v75
    %v227 = vunpack.c.l.b16 %v76
    %v228 = vunpack.c.l.b16 %v77
    %v229 = vunpack.c.l.b16 %v78
    %v230 = vunpack.c.l.b16 %v79
    %v231 = vunpack.c.l.b16 %v80
    %v232 = vunpack.c.l.b16 %v81
    %v233 = vunpack.c.l.b16 %v82
    %v234 = vunpack.c.l.b16 %v83
    %v235 = vunpack.c.l.b16 %v84
    %v236 = vunpack.c.l.b16 %v85
    %v237 = vunpack.c.l.b16 %v86
    %v238 = vunpack.c.l.b16 %v87
    %v239 = vunpack.c.l.b16 %v88
    %v240 = vunpack.c.l.b16 %v89
    %v241 = vunpack.c.l.b16 %v90
    %v242 = vunpack.c.l.b16 %v91
    %v243 = vunpack.c.l.b16 %v92
    %v244 = vunpack.c.l.b16 %v93
    %v245 = vunpack.c.l.b16 %v94
    %v246 = vunpack.c.l.b16 %v95
    %v247 = vunpack.c.l.b16 %v96
    %v248 = vunpack.c.l.b16 %v97
    %v249 = vunpack.c.l.b16 %v98
    %v250 = vpack.c.b16 %v187, %v186
    %v251 = vpack.c.b16 %v189, %v188
    %v252 = vpack.c.b16 %v191, %v190
    %v253 = vpack.c.b16 %v193, %v192
    %v254 = vpack.c.b16 %v195, %v194
    %v255 = vpack.c.b16 %v197, %v196
    %v256 = vpack.c.b16 %v199, %v198
    %v257 = vpack.c.b16 %v201, %v200
    %v258 = vpack.c.b16 %v203, %v202
    %v259 = vpack.c.b16 %v205, %v204
    %v260 = vpack.c.b16 %v207, %v206
    %v261 = vpack.c.b16 %v209, %v208
    %v262 = vpack.c.b16 %v211, %v210
    %v263 = vpack.c.b16 %v213, %v212
    %v264 = vpack.c.b16 %v215, %v214
    %v265 = vpack.c.b16 %v217, %v216
    %v266 = vpack.c.b16 %v219, %v218
    %v267 = vpack.c.b16 %v221, %v220
    %v268 = vpack.c.b16 %v223, %v222
    %v269 = vpack.c.b16 %v225, %v224
    %v270 = vpack.c.b16 %v227, %v226
    %v271 = vpack.c.b16 %v229, %v228
    %v272 = vpack.c.b16 %v231, %v230
    %v273 = vpack.c.b16 %v233, %v232
    %v274 = vpack.c.b16 %v235, %v234
    %v275 = vpack.c.b16 %v237, %v236
    %v276 = vpack.c.b16 %v239, %v238
    %v277 = vpack.c.b16 %v241, %v240
    %v278 = vpack.c.b16 %v243, %v242
    %v279 = vpack.c.b16 %v245, %v244
    %v280 = vpack.c.b16 %v247, %v246
    %v281 = vpack.c.b16 %v249, %v248
    %v330 = vunpack.c.l.b16 %v99
    %v331 = vunpack.c.l.b16 %v100
    %v332 = vunpack.c.l.b16 %v101
    %v333 = vunpack.c.l.b16 %v102
    %v334 = vunpack.c.l.b16 %v103
    %v335 = vunpack.c.l.b16 %v104
    %v336 = vunpack.c.l.b16 %v105
    %v337 = vunpack.c.l.b16 %v106
    %v338 = vunpack.c.l.b16 %v107
    %v339 = vunpack.c.l.b16 %v108
    %v340 = vunpack.c.l.b16 %v109
    %v341 = vunpack.c.l.b16 %v110
    %v342 = vunpack.c.l.b16 %v111
    %v343 = vunpack.c.l.b16 %v112
    %v344 = vunpack.c.l.b16 %v113
    %v345 = vunpack.c.l.b16 %v114
    %v346 = vpack.c.b16 %v331, %v330
    %v347 = vpack.c.b16 %v333, %v332
    %v348 = vpack.c.b16 %v335, %v334
    %v349 = vpack.c.b16 %v337, %v336
    %v350 = vpack.c.b16 %v339, %v338
    %v351 = vpack.c.b16 %v341, %v340
    %v352 = vpack.c.b16 %v343, %v342
    %v353 = vpack.c.b16 %v345, %v344
    %362 = vmatprep.subr.bf16.mxu0 0
    %363 = vmatpush1.bf16.msra.mxu0 %v353
    %364 = vmatprep.subr.bf16.mxu0 0
    %365 = vmatpush1.bf16.msra.mxu0 %v352
    %366 = vmatprep.subr.bf16.mxu0 0
    %367 = vmatpush1.bf16.msra.mxu0 %v351
    %368 = vmatprep.subr.bf16.mxu0 0
    %369 = vmatpush1.bf16.msra.mxu0 %v350
    %370 = vmatprep.subr.bf16.mxu0 0
    %371 = vmatpush1.bf16.msra.mxu0 %v349
    %372 = vmatprep.subr.bf16.mxu0 0
    %373 = vmatpush1.bf16.msra.mxu0 %v348
    %374 = vmatprep.subr.bf16.mxu0 0
    %375 = vmatpush1.bf16.msra.mxu0 %v347
    %376 = vmatprep.subr.bf16.mxu0 0
    %377 = vmatpush1.bf16.msra.mxu0 %v346
    %378 = vmatprep.subr.bf16.mxu0 0
    %379 = vmatpush2.bf16.msra.mxu0 0
    %380 = vmatprep.subr.bf16.mxu0 0
    %381 = vmatpush2.bf16.msra.mxu0 0
    %382 = vmatprep.subr.bf16.mxu0 0
    %383 = vmatpush2.bf16.msra.mxu0 0
    %384 = vmatprep.subr.bf16.mxu0 0
    %385 = vmatpush2.bf16.msra.mxu0 0
    %386 = vmatprep.subr.bf16.mxu0 0
    %387 = vmatpush2.bf16.msra.mxu0 0
    %388 = vmatprep.subr.bf16.mxu0 0
    %389 = vmatpush2.bf16.msra.mxu0 0
    %390 = vmatprep.subr.bf16.mxu0 0
    %391 = vmatpush2.bf16.msra.mxu0 0
    %392 = vmatprep.subr.bf16.mxu0 0
    %393 = vmatpush2.bf16.msra.mxu0 0
    %394 = vmatprep.mubr.bf16.mxu0 0
    %395 = vmatmul.mubr.bf16.gmra.mxu0 %v250
    %v396 = vpop.f32.mrf.mxu0
    %v397 = vadd.f32 %v120, %v396
    %v398 = vpop.f32.mrf.mxu0
    %v399 = vpop.f32.mrf.mxu0
    %v400 = vadd.f32 %v120, %v399
    %v401 = vpop.f32.mrf.mxu0
    %402 = vmatprep.mubr.bf16.mxu0 0
    %403 = vmatmul.mubr.bf16.gmra.mxu0 %v251
    %v404 = vpop.f32.mrf.mxu0
    %v405 = vadd.f32 %v120, %v404
    %v406 = vpop.f32.mrf.mxu0
    %v407 = vpop.f32.mrf.mxu0
    %v408 = vadd.f32 %v120, %v407
    %v409 = vpop.f32.mrf.mxu0
    %410 = vmatprep.mubr.bf16.mxu0 0
    %411 = vmatmul.mubr.bf16.gmra.mxu0 %v252
    %v412 = vpop.f32.mrf.mxu0
    %v413 = vadd.f32 %v120, %v412
    %v414 = vpop.f32.mrf.mxu0
    %v415 = vpop.f32.mrf.mxu0
    %v416 = vadd.f32 %v120, %v415
    %v417 = vpop.f32.mrf.mxu0
    %418 = vmatprep.mubr.bf16.mxu0 0
    %419 = vmatmul.mubr.bf16.gmra.mxu0 %v253
    %v420 = vpop.f32.mrf.mxu0
    %v421 = vadd.f32 %v120, %v420
    %v422 = vpop.f32.mrf.mxu0
    %v423 = vpop.f32.mrf.mxu0
    %v424 = vadd.f32 %v120, %v423
    %v425 = vpop.f32.mrf.mxu0
    %426 = vmatprep.mubr.bf16.mxu0 0
    %427 = vmatmul.mubr.bf16.gmra.mxu0 %v254
    %v428 = vpop.f32.mrf.mxu0
    %v429 = vadd.f32 %v120, %v428
    %v430 = vpop.f32.mrf.mxu0
    %v431 = vpop.f32.mrf.mxu0
    %v432 = vadd.f32 %v120, %v431
    %v433 = vpop.f32.mrf.mxu0
    %434 = vmatprep.mubr.bf16.mxu0 0
    %435 = vmatmul.mubr.bf16.gmra.mxu0 %v255
    %v436 = vpop.f32.mrf.mxu0
    %v437 = vadd.f32 %v120, %v436
    %v438 = vpop.f32.mrf.mxu0
    %v439 = vpop.f32.mrf.mxu0
    %v440 = vadd.f32 %v120, %v439
    %v441 = vpop.f32.mrf.mxu0
    %442 = vmatprep.mubr.bf16.mxu0 0
    %443 = vmatmul.mubr.bf16.gmra.mxu0 %v256
    %v444 = vpop.f32.mrf.mxu0
    %v445 = vadd.f32 %v120, %v444
    %v446 = vpop.f32.mrf.mxu0
    %v447 = vpop.f32.mrf.mxu0
    %v448 = vadd.f32 %v120, %v447
    %v449 = vpop.f32.mrf.mxu0
    %450 = vmatprep.mubr.bf16.mxu0 0
    %451 = vmatmul.mubr.bf16.gmra.mxu0 %v257
    %v452 = vpop.f32.mrf.mxu0
    %v453 = vadd.f32 %v120, %v452
    %v454 = vpop.f32.mrf.mxu0
    %v455 = vpop.f32.mrf.mxu0
    %v456 = vadd.f32 %v120, %v455
    %v457 = vpop.f32.mrf.mxu0
    %458 = vmatprep.mubr.bf16.mxu0 0
    %459 = vmatmul.mubr.bf16.gmra.mxu0 %v258
    %v460 = vpop.f32.mrf.mxu0
    %v461 = vadd.f32 %v120, %v460
    %v462 = vpop.f32.mrf.mxu0
    %v463 = vpop.f32.mrf.mxu0
    %v464 = vadd.f32 %v120, %v463
    %v465 = vpop.f32.mrf.mxu0
    %466 = vmatprep.mubr.bf16.mxu0 0
    %467 = vmatmul.mubr.bf16.gmra.mxu0 %v259
    %v468 = vpop.f32.mrf.mxu0
    %v469 = vadd.f32 %v120, %v468
    %v470 = vpop.f32.mrf.mxu0
    %v471 = vpop.f32.mrf.mxu0
    %v472 = vadd.f32 %v120, %v471
    %v473 = vpop.f32.mrf.mxu0
    %474 = vmatprep.mubr.bf16.mxu0 0
    %475 = vmatmul.mubr.bf16.gmra.mxu0 %v260
    %v476 = vpop.f32.mrf.mxu0
    %v477 = vadd.f32 %v120, %v476
    %v478 = vpop.f32.mrf.mxu0
    %v479 = vpop.f32.mrf.mxu0
    %v480 = vadd.f32 %v120, %v479
    %v481 = vpop.f32.mrf.mxu0
    %482 = vmatprep.mubr.bf16.mxu0 0
    %483 = vmatmul.mubr.bf16.gmra.mxu0 %v261
    %v484 = vpop.f32.mrf.mxu0
    %v485 = vadd.f32 %v120, %v484
    %v486 = vpop.f32.mrf.mxu0
    %v487 = vpop.f32.mrf.mxu0
    %v488 = vadd.f32 %v120, %v487
    %v489 = vpop.f32.mrf.mxu0
    %490 = vmatprep.mubr.bf16.mxu0 0
    %491 = vmatmul.mubr.bf16.gmra.mxu0 %v262
    %v492 = vpop.f32.mrf.mxu0
    %v493 = vadd.f32 %v120, %v492
    %v494 = vpop.f32.mrf.mxu0
    %v495 = vpop.f32.mrf.mxu0
    %v496 = vadd.f32 %v120, %v495
    %v497 = vpop.f32.mrf.mxu0
    %498 = vmatprep.mubr.bf16.mxu0 0
    %499 = vmatmul.mubr.bf16.gmra.mxu0 %v263
    %v500 = vpop.f32.mrf.mxu0
    %v501 = vadd.f32 %v120, %v500
    %v502 = vpop.f32.mrf.mxu0
    %v503 = vpop.f32.mrf.mxu0
    %v504 = vadd.f32 %v120, %v503
    %v505 = vpop.f32.mrf.mxu0
    %506 = vmatprep.mubr.bf16.mxu0 0
    %507 = vmatmul.mubr.bf16.gmra.mxu0 %v264
    %v508 = vpop.f32.mrf.mxu0
    %v509 = vadd.f32 %v120, %v508
    %v510 = vpop.f32.mrf.mxu0
    %v511 = vpop.f32.mrf.mxu0
    %v512 = vadd.f32 %v120, %v511
    %v513 = vpop.f32.mrf.mxu0
    %514 = vmatprep.mubr.bf16.mxu0 0
    %515 = vmatmul.mubr.bf16.gmra.mxu0 %v265
    %v516 = vpop.f32.mrf.mxu0
    %v517 = vadd.f32 %v120, %v516
    %v518 = vpop.f32.mrf.mxu0
    %v519 = vpop.f32.mrf.mxu0
    %v520 = vadd.f32 %v120, %v519
    %v521 = vpop.f32.mrf.mxu0
    %522 = vmatprep.mubr.bf16.mxu0 0
    %523 = vmatmul.mubr.bf16.gmra.mxu0 %v266
    %v524 = vpop.f32.mrf.mxu0
    %v525 = vadd.f32 %v120, %v524
    %v526 = vpop.f32.mrf.mxu0
    %v527 = vpop.f32.mrf.mxu0
    %v528 = vadd.f32 %v120, %v527
    %v529 = vpop.f32.mrf.mxu0
    %530 = vmatprep.mubr.bf16.mxu0 0
    %531 = vmatmul.mubr.bf16.gmra.mxu0 %v267
    %v532 = vpop.f32.mrf.mxu0
    %v533 = vadd.f32 %v120, %v532
    %v534 = vpop.f32.mrf.mxu0
    %v535 = vpop.f32.mrf.mxu0
    %v536 = vadd.f32 %v120, %v535
    %v537 = vpop.f32.mrf.mxu0
    %538 = vmatprep.mubr.bf16.mxu0 0
    %539 = vmatmul.mubr.bf16.gmra.mxu0 %v268
    %v540 = vpop.f32.mrf.mxu0
    %v541 = vadd.f32 %v120, %v540
    %v542 = vpop.f32.mrf.mxu0
    %v543 = vpop.f32.mrf.mxu0
    %v544 = vadd.f32 %v120, %v543
    %v545 = vpop.f32.mrf.mxu0
    %546 = vmatprep.mubr.bf16.mxu0 0
    %547 = vmatmul.mubr.bf16.gmra.mxu0 %v269
    %v548 = vpop.f32.mrf.mxu0
    %v549 = vadd.f32 %v120, %v548
    %v550 = vpop.f32.mrf.mxu0
    %v551 = vpop.f32.mrf.mxu0
    %v552 = vadd.f32 %v120, %v551
    %v553 = vpop.f32.mrf.mxu0
    %554 = vmatprep.mubr.bf16.mxu0 0
    %555 = vmatmul.mubr.bf16.gmra.mxu0 %v270
    %v556 = vpop.f32.mrf.mxu0
    %v557 = vadd.f32 %v120, %v556
    %v558 = vpop.f32.mrf.mxu0
    %v559 = vpop.f32.mrf.mxu0
    %v560 = vadd.f32 %v120, %v559
    %v561 = vpop.f32.mrf.mxu0
    %562 = vmatprep.mubr.bf16.mxu0 0
    %563 = vmatmul.mubr.bf16.gmra.mxu0 %v271
    %v564 = vpop.f32.mrf.mxu0
    %v565 = vadd.f32 %v120, %v564
    %v566 = vpop.f32.mrf.mxu0
    %v567 = vpop.f32.mrf.mxu0
    %v568 = vadd.f32 %v120, %v567
    %v569 = vpop.f32.mrf.mxu0
    %570 = vmatprep.mubr.bf16.mxu0 0
    %571 = vmatmul.mubr.bf16.gmra.mxu0 %v272
    %v572 = vpop.f32.mrf.mxu0
    %v573 = vadd.f32 %v120, %v572
    %v574 = vpop.f32.mrf.mxu0
    %v575 = vpop.f32.mrf.mxu0
    %v576 = vadd.f32 %v120, %v575
    %v577 = vpop.f32.mrf.mxu0
    %578 = vmatprep.mubr.bf16.mxu0 0
    %579 = vmatmul.mubr.bf16.gmra.mxu0 %v273
    %v580 = vpop.f32.mrf.mxu0
    %v581 = vadd.f32 %v120, %v580
    %v582 = vpop.f32.mrf.mxu0
    %v583 = vpop.f32.mrf.mxu0
    %v584 = vadd.f32 %v120, %v583
    %v585 = vpop.f32.mrf.mxu0
    %586 = vmatprep.mubr.bf16.mxu0 0
    %587 = vmatmul.mubr.bf16.gmra.mxu0 %v274
    %v588 = vpop.f32.mrf.mxu0
    %v589 = vadd.f32 %v120, %v588
    %v590 = vpop.f32.mrf.mxu0
    %v591 = vpop.f32.mrf.mxu0
    %v592 = vadd.f32 %v120, %v591
    %v593 = vpop.f32.mrf.mxu0
    %594 = vmatprep.mubr.bf16.mxu0 0
    %595 = vmatmul.mubr.bf16.gmra.mxu0 %v275
    %v596 = vpop.f32.mrf.mxu0
    %v597 = vadd.f32 %v120, %v596
    %v598 = vpop.f32.mrf.mxu0
    %v599 = vpop.f32.mrf.mxu0
    %v600 = vadd.f32 %v120, %v599
    %v601 = vpop.f32.mrf.mxu0
    %602 = vmatprep.mubr.bf16.mxu0 0
    %603 = vmatmul.mubr.bf16.gmra.mxu0 %v276
    %v604 = vpop.f32.mrf.mxu0
    %v605 = vadd.f32 %v120, %v604
    %v606 = vpop.f32.mrf.mxu0
    %v607 = vpop.f32.mrf.mxu0
    %v608 = vadd.f32 %v120, %v607
    %v609 = vpop.f32.mrf.mxu0
    %610 = vmatprep.mubr.bf16.mxu0 0
    %611 = vmatmul.mubr.bf16.gmra.mxu0 %v277
    %v612 = vpop.f32.mrf.mxu0
    %v613 = vadd.f32 %v120, %v612
    %v614 = vpop.f32.mrf.mxu0
    %v615 = vpop.f32.mrf.mxu0
    %v616 = vadd.f32 %v120, %v615
    %v617 = vpop.f32.mrf.mxu0
    %618 = vmatprep.mubr.bf16.mxu0 0
    %619 = vmatmul.mubr.bf16.gmra.mxu0 %v278
    %v620 = vpop.f32.mrf.mxu0
    %v621 = vadd.f32 %v120, %v620
    %v622 = vpop.f32.mrf.mxu0
    %v623 = vpop.f32.mrf.mxu0
    %v624 = vadd.f32 %v120, %v623
    %v625 = vpop.f32.mrf.mxu0
    %626 = vmatprep.mubr.bf16.mxu0 0
    %627 = vmatmul.mubr.bf16.gmra.mxu0 %v279
    %v628 = vpop.f32.mrf.mxu0
    %v629 = vadd.f32 %v120, %v628
    %v630 = vpop.f32.mrf.mxu0
    %v631 = vpop.f32.mrf.mxu0
    %v632 = vadd.f32 %v120, %v631
    %v633 = vpop.f32.mrf.mxu0
    %634 = vmatprep.mubr.bf16.mxu0 0
    %635 = vmatmul.mubr.bf16.gmra.mxu0 %v280
    %v636 = vpop.f32.mrf.mxu0
    %v637 = vadd.f32 %v120, %v636
    %v638 = vpop.f32.mrf.mxu0
    %v639 = vpop.f32.mrf.mxu0
    %v640 = vadd.f32 %v120, %v639
    %v641 = vpop.f32.mrf.mxu0
    %642 = vmatprep.mubr.bf16.mxu0 0
    %643 = vmatmul.mubr.bf16.gmra.mxu0 %v281
    %v644 = vpop.f32.mrf.mxu0
    %v645 = vadd.f32 %v120, %v644
    %v646 = vpop.f32.mrf.mxu0
    %v647 = vpop.f32.mrf.mxu0
    %v648 = vadd.f32 %v120, %v647
    %v649 = vpop.f32.mrf.mxu0
    %650 = vdwg.mxu0
    %vm651 = vcmp.gt.f32.partialorder %v397, 0.0
    %vm652 = vcmp.gt.f32.partialorder %v400, 0.0
    %vm653 = vcmp.gt.f32.partialorder %v405, 0.0
    %vm654 = vcmp.gt.f32.partialorder %v408, 0.0
    %vm655 = vcmp.gt.f32.partialorder %v413, 0.0
    %vm656 = vcmp.gt.f32.partialorder %v416, 0.0
    %vm657 = vcmp.gt.f32.partialorder %v421, 0.0
    %vm658 = vcmp.gt.f32.partialorder %v424, 0.0
    %vm659 = vcmp.gt.f32.partialorder %v429, 0.0
    %vm660 = vcmp.gt.f32.partialorder %v432, 0.0
    %vm661 = vcmp.gt.f32.partialorder %v437, 0.0
    %vm662 = vcmp.gt.f32.partialorder %v440, 0.0
    %vm663 = vcmp.gt.f32.partialorder %v445, 0.0
    %vm664 = vcmp.gt.f32.partialorder %v448, 0.0
    %vm665 = vcmp.gt.f32.partialorder %v453, 0.0
    %vm666 = vcmp.gt.f32.partialorder %v456, 0.0
    %vm667 = vcmp.gt.f32.partialorder %v461, 0.0
    %vm668 = vcmp.gt.f32.partialorder %v464, 0.0
    %vm669 = vcmp.gt.f32.partialorder %v469, 0.0
    %vm670 = vcmp.gt.f32.partialorder %v472, 0.0
    %vm671 = vcmp.gt.f32.partialorder %v477, 0.0
    %vm672 = vcmp.gt.f32.partialorder %v480, 0.0
    %vm673 = vcmp.gt.f32.partialorder %v485, 0.0
    %vm674 = vcmp.gt.f32.partialorder %v488, 0.0
    %vm675 = vcmp.gt.f32.partialorder %v493, 0.0
    %vm676 = vcmp.gt.f32.partialorder %v496, 0.0
    %vm677 = vcmp.gt.f32.partialorder %v501, 0.0
    %vm678 = vcmp.gt.f32.partialorder %v504, 0.0
    %vm679 = vcmp.gt.f32.partialorder %v509, 0.0
    %vm680 = vcmp.gt.f32.partialorder %v512, 0.0
    %vm681 = vcmp.gt.f32.partialorder %v517, 0.0
    %vm682 = vcmp.gt.f32.partialorder %v520, 0.0
    %vm683 = vcmp.gt.f32.partialorder %v525, 0.0
    %vm684 = vcmp.gt.f32.partialorder %v528, 0.0
    %vm685 = vcmp.gt.f32.partialorder %v533, 0.0
    %vm686 = vcmp.gt.f32.partialorder %v536, 0.0
    %vm687 = vcmp.gt.f32.partialorder %v541, 0.0
    %vm688 = vcmp.gt.f32.partialorder %v544, 0.0
    %vm689 = vcmp.gt.f32.partialorder %v549, 0.0
    %vm690 = vcmp.gt.f32.partialorder %v552, 0.0
    %vm691 = vcmp.gt.f32.partialorder %v557, 0.0
    %vm692 = vcmp.gt.f32.partialorder %v560, 0.0
    %vm693 = vcmp.gt.f32.partialorder %v565, 0.0
    %vm694 = vcmp.gt.f32.partialorder %v568, 0.0
    %vm695 = vcmp.gt.f32.partialorder %v573, 0.0
    %vm696 = vcmp.gt.f32.partialorder %v576, 0.0
    %vm697 = vcmp.gt.f32.partialorder %v581, 0.0
    %vm698 = vcmp.gt.f32.partialorder %v584, 0.0
    %vm699 = vcmp.gt.f32.partialorder %v589, 0.0
    %vm700 = vcmp.gt.f32.partialorder %v592, 0.0
    %vm701 = vcmp.gt.f32.partialorder %v597, 0.0
    %vm702 = vcmp.gt.f32.partialorder %v600, 0.0
    %vm703 = vcmp.gt.f32.partialorder %v605, 0.0
    %vm704 = vcmp.gt.f32.partialorder %v608, 0.0
    %vm705 = vcmp.gt.f32.partialorder %v613, 0.0
    %vm706 = vcmp.gt.f32.partialorder %v616, 0.0
    %vm707 = vcmp.gt.f32.partialorder %v621, 0.0
    %vm708 = vcmp.gt.f32.partialorder %v624, 0.0
    %vm709 = vcmp.gt.f32.partialorder %v629, 0.0
    %vm710 = vcmp.gt.f32.partialorder %v632, 0.0
    %vm711 = vcmp.gt.f32.partialorder %v637, 0.0
    %vm712 = vcmp.gt.f32.partialorder %v640, 0.0
    %vm713 = vcmp.gt.f32.partialorder %v645, 0.0
    %vm714 = vcmp.gt.f32.partialorder %v648, 0.0
    %v715 = vmul.f32 %v397, 1.442695
    %v716 = vpow.pop %v715
    %v717 = vmul.f32 %v400, 1.442695
    %v718 = vpow.pop %v717
    %v719 = vmul.f32 %v405, 1.442695
    %v720 = vpow.pop %v719
    %v721 = vmul.f32 %v408, 1.442695
    %v722 = vpow.pop %v721
    %v723 = vmul.f32 %v413, 1.442695
    %v724 = vpow.pop %v723
    %v725 = vmul.f32 %v416, 1.442695
    %v726 = vpow.pop %v725
    %v727 = vmul.f32 %v421, 1.442695
    %v728 = vpow.pop %v727
    %v729 = vmul.f32 %v424, 1.442695
    %v730 = vpow.pop %v729
    %v731 = vmul.f32 %v429, 1.442695
    %v732 = vpow.pop %v731
    %v733 = vmul.f32 %v432, 1.442695
    %v734 = vpow.pop %v733
    %v735 = vmul.f32 %v437, 1.442695
    %v736 = vpow.pop %v735
    %v737 = vmul.f32 %v440, 1.442695
    %v738 = vpow.pop %v737
    %v739 = vmul.f32 %v445, 1.442695
    %v740 = vpow.pop %v739
    %v741 = vmul.f32 %v448, 1.442695
    %v742 = vpow.pop %v741
    %v743 = vmul.f32 %v453, 1.442695
    %v744 = vpow.pop %v743
    %v745 = vmul.f32 %v456, 1.442695
    %v746 = vpow.pop %v745
    %v747 = vmul.f32 %v461, 1.442695
    %v748 = vpow.pop %v747
    %v749 = vmul.f32 %v464, 1.442695
    %v750 = vpow.pop %v749
    %v751 = vmul.f32 %v469, 1.442695
    %v752 = vpow.pop %v751
    %v753 = vmul.f32 %v472, 1.442695
    %v754 = vpow.pop %v753
    %v755 = vmul.f32 %v477, 1.442695
    %v756 = vpow.pop %v755
    %v757 = vmul.f32 %v480, 1.442695
    %v758 = vpow.pop %v757
    %v759 = vmul.f32 %v485, 1.442695
    %v760 = vpow.pop %v759
    %v761 = vmul.f32 %v488, 1.442695
    %v762 = vpow.pop %v761
    %v763 = vmul.f32 %v493, 1.442695
    %v764 = vpow.pop %v763
    %v765 = vmul.f32 %v496, 1.442695
    %v766 = vpow.pop %v765
    %v767 = vmul.f32 %v501, 1.442695
    %v768 = vpow.pop %v767
    %v769 = vmul.f32 %v504, 1.442695
    %v770 = vpow.pop %v769
    %v771 = vmul.f32 %v509, 1.442695
    %v772 = vpow.pop %v771
    %v773 = vmul.f32 %v512, 1.442695
    %v774 = vpow.pop %v773
    %v775 = vmul.f32 %v517, 1.442695
    %v776 = vpow.pop %v775
    %v777 = vmul.f32 %v520, 1.442695
    %v778 = vpow.pop %v777
    %v779 = vmul.f32 %v525, 1.442695
    %v780 = vpow.pop %v779
    %v781 = vmul.f32 %v528, 1.442695
    %v782 = vpow.pop %v781
    %v783 = vmul.f32 %v533, 1.442695
    %v784 = vpow.pop %v783
    %v785 = vmul.f32 %v536, 1.442695
    %v786 = vpow.pop %v785
    %v787 = vmul.f32 %v541, 1.442695
    %v788 = vpow.pop %v787
    %v789 = vmul.f32 %v544, 1.442695
    %v790 = vpow.pop %v789
    %v791 = vmul.f32 %v549, 1.442695
    %v792 = vpow.pop %v791
    %v793 = vmul.f32 %v552, 1.442695
    %v794 = vpow.pop %v793
    %v795 = vmul.f32 %v557, 1.442695
    %v796 = vpow.pop %v795
    %v797 = vmul.f32 %v560, 1.442695
    %v798 = vpow.pop %v797
    %v799 = vmul.f32 %v565, 1.442695
    %v800 = vpow.pop %v799
    %v801 = vmul.f32 %v568, 1.442695
    %v802 = vpow.pop %v801
    %v803 = vmul.f32 %v573, 1.442695
    %v804 = vpow.pop %v803
    %v805 = vmul.f32 %v576, 1.442695
    %v806 = vpow.pop %v805
    %v807 = vmul.f32 %v581, 1.442695
    %v808 = vpow.pop %v807
    %v809 = vmul.f32 %v584, 1.442695
    %v810 = vpow.pop %v809
    %v811 = vmul.f32 %v589, 1.442695
    %v812 = vpow.pop %v811
    %v813 = vmul.f32 %v592, 1.442695
    %v814 = vpow.pop %v813
    %v815 = vmul.f32 %v597, 1.442695
    %v816 = vpow.pop %v815
    %v817 = vmul.f32 %v600, 1.442695
    %v818 = vpow.pop %v817
    %v819 = vmul.f32 %v605, 1.442695
    %v820 = vpow.pop %v819
    %v821 = vmul.f32 %v608, 1.442695
    %v822 = vpow.pop %v821
    %v823 = vmul.f32 %v613, 1.442695
    %v824 = vpow.pop %v823
    %v825 = vmul.f32 %v616, 1.442695
    %v826 = vpow.pop %v825
    %v827 = vmul.f32 %v621, 1.442695
    %v828 = vpow.pop %v827
    %v829 = vmul.f32 %v624, 1.442695
    %v830 = vpow.pop %v829
    %v831 = vmul.f32 %v629, 1.442695
    %v832 = vpow.pop %v831
    %v833 = vmul.f32 %v632, 1.442695
    %v834 = vpow.pop %v833
    %v835 = vmul.f32 %v637, 1.442695
    %v836 = vpow.pop %v835
    %v837 = vmul.f32 %v640, 1.442695
    %v838 = vpow.pop %v837
    %v839 = vmul.f32 %v645, 1.442695
    %v840 = vpow.pop %v839
    %v841 = vmul.f32 %v648, 1.442695
    %v842 = vpow.pop %v841
    %v843 = vsub.f32 %v716, 1.0
    %v844 = vsub.f32 %v718, 1.0
    %v845 = vsub.f32 %v720, 1.0
    %v846 = vsub.f32 %v722, 1.0
    %v847 = vsub.f32 %v724, 1.0
    %v848 = vsub.f32 %v726, 1.0
    %v849 = vsub.f32 %v728, 1.0
    %v850 = vsub.f32 %v730, 1.0
    %v851 = vsub.f32 %v732, 1.0
    %v852 = vsub.f32 %v734, 1.0
    %v853 = vsub.f32 %v736, 1.0
    %v854 = vsub.f32 %v738, 1.0
    %v855 = vsub.f32 %v740, 1.0
    %v856 = vsub.f32 %v742, 1.0
    %v857 = vsub.f32 %v744, 1.0
    %v858 = vsub.f32 %v746, 1.0
    %v859 = vsub.f32 %v748, 1.0
    %v860 = vsub.f32 %v750, 1.0
    %v861 = vsub.f32 %v752, 1.0
    %v862 = vsub.f32 %v754, 1.0
    %v863 = vsub.f32 %v756, 1.0
    %v864 = vsub.f32 %v758, 1.0
    %v865 = vsub.f32 %v760, 1.0
    %v866 = vsub.f32 %v762, 1.0
    %v867 = vsub.f32 %v764, 1.0
    %v868 = vsub.f32 %v766, 1.0
    %v869 = vsub.f32 %v768, 1.0
    %v870 = vsub.f32 %v770, 1.0
    %v871 = vsub.f32 %v772, 1.0
    %v872 = vsub.f32 %v774, 1.0
    %v873 = vsub.f32 %v776, 1.0
    %v874 = vsub.f32 %v778, 1.0
    %v875 = vsub.f32 %v780, 1.0
    %v876 = vsub.f32 %v782, 1.0
    %v877 = vsub.f32 %v784, 1.0
    %v878 = vsub.f32 %v786, 1.0
    %v879 = vsub.f32 %v788, 1.0
    %v880 = vsub.f32 %v790, 1.0
    %v881 = vsub.f32 %v792, 1.0
    %v882 = vsub.f32 %v794, 1.0
    %v883 = vsub.f32 %v796, 1.0
    %v884 = vsub.f32 %v798, 1.0
    %v885 = vsub.f32 %v800, 1.0
    %v886 = vsub.f32 %v802, 1.0
    %v887 = vsub.f32 %v804, 1.0
    %v888 = vsub.f32 %v806, 1.0
    %v889 = vsub.f32 %v808, 1.0
    %v890 = vsub.f32 %v810, 1.0
    %v891 = vsub.f32 %v812, 1.0
    %v892 = vsub.f32 %v814, 1.0
    %v893 = vsub.f32 %v816, 1.0
    %v894 = vsub.f32 %v818, 1.0
    %v895 = vsub.f32 %v820, 1.0
    %v896 = vsub.f32 %v822, 1.0
    %v897 = vsub.f32 %v824, 1.0
    %v898 = vsub.f32 %v826, 1.0
    %v899 = vsub.f32 %v828, 1.0
    %v900 = vsub.f32 %v830, 1.0
    %v901 = vsub.f32 %v832, 1.0
    %v902 = vsub.f32 %v834, 1.0
    %v903 = vsub.f32 %v836, 1.0
    %v904 = vsub.f32 %v838, 1.0
    %v905 = vsub.f32 %v840, 1.0
    %v906 = vsub.f32 %v842, 1.0
    %v907 = vsel %vm651, %v397, %v843
    %v908 = vsel %vm652, %v400, %v844
    %v909 = vsel %vm653, %v405, %v845
    %v910 = vsel %vm654, %v408, %v846
    %v911 = vsel %vm655, %v413, %v847
    %v912 = vsel %vm656, %v416, %v848
    %v913 = vsel %vm657, %v421, %v849
    %v914 = vsel %vm658, %v424, %v850
    %v915 = vsel %vm659, %v429, %v851
    %v916 = vsel %vm660, %v432, %v852
    %v917 = vsel %vm661, %v437, %v853
    %v918 = vsel %vm662, %v440, %v854
    %v919 = vsel %vm663, %v445, %v855
    %v920 = vsel %vm664, %v448, %v856
    %v921 = vsel %vm665, %v453, %v857
    %v922 = vsel %vm666, %v456, %v858
    %v923 = vsel %vm667, %v461, %v859
    %v924 = vsel %vm668, %v464, %v860
    %v925 = vsel %vm669, %v469, %v861
    %v926 = vsel %vm670, %v472, %v862
    %v927 = vsel %vm671, %v477, %v863
    %v928 = vsel %vm672, %v480, %v864
    %v929 = vsel %vm673, %v485, %v865
    %v930 = vsel %vm674, %v488, %v866
    %v931 = vsel %vm675, %v493, %v867
    %v932 = vsel %vm676, %v496, %v868
    %v933 = vsel %vm677, %v501, %v869
    %v934 = vsel %vm678, %v504, %v870
    %v935 = vsel %vm679, %v509, %v871
    %v936 = vsel %vm680, %v512, %v872
    %v937 = vsel %vm681, %v517, %v873
    %v938 = vsel %vm682, %v520, %v874
    %v939 = vsel %vm683, %v525, %v875
    %v940 = vsel %vm684, %v528, %v876
    %v941 = vsel %vm685, %v533, %v877
    %v942 = vsel %vm686, %v536, %v878
    %v943 = vsel %vm687, %v541, %v879
    %v944 = vsel %vm688, %v544, %v880
    %v945 = vsel %vm689, %v549, %v881
    %v946 = vsel %vm690, %v552, %v882
    %v947 = vsel %vm691, %v557, %v883
    %v948 = vsel %vm692, %v560, %v884
    %v949 = vsel %vm693, %v565, %v885
    %v950 = vsel %vm694, %v568, %v886
    %v951 = vsel %vm695, %v573, %v887
    %v952 = vsel %vm696, %v576, %v888
    %v953 = vsel %vm697, %v581, %v889
    %v954 = vsel %vm698, %v584, %v890
    %v955 = vsel %vm699, %v589, %v891
    %v956 = vsel %vm700, %v592, %v892
    %v957 = vsel %vm701, %v597, %v893
    %v958 = vsel %vm702, %v600, %v894
    %v959 = vsel %vm703, %v605, %v895
    %v960 = vsel %vm704, %v608, %v896
    %v961 = vsel %vm705, %v613, %v897
    %v962 = vsel %vm706, %v616, %v898
    %v963 = vsel %vm707, %v621, %v899
    %v964 = vsel %vm708, %v624, %v900
    %v965 = vsel %vm709, %v629, %v901
    %v966 = vsel %vm710, %v632, %v902
    %v967 = vsel %vm711, %v637, %v903
    %v968 = vsel %vm712, %v640, %v904
    %v969 = vsel %vm713, %v645, %v905
    %v970 = vsel %vm714, %v648, %v906
    %v971 = vpack.c.bf16 %v908, %v907
    %v972 = vpack.c.bf16 %v910, %v909
    %v973 = vpack.c.bf16 %v912, %v911
    %v974 = vpack.c.bf16 %v914, %v913
    %v975 = vpack.c.bf16 %v916, %v915
    %v976 = vpack.c.bf16 %v918, %v917
    %v977 = vpack.c.bf16 %v920, %v919
    %v978 = vpack.c.bf16 %v922, %v921
    %v979 = vpack.c.bf16 %v924, %v923
    %v980 = vpack.c.bf16 %v926, %v925
    %v981 = vpack.c.bf16 %v928, %v927
    %v982 = vpack.c.bf16 %v930, %v929
    %v983 = vpack.c.bf16 %v932, %v931
    %v984 = vpack.c.bf16 %v934, %v933
    %v985 = vpack.c.bf16 %v936, %v935
    %v986 = vpack.c.bf16 %v938, %v937
    %v987 = vpack.c.bf16 %v940, %v939
    %v988 = vpack.c.bf16 %v942, %v941
    %v989 = vpack.c.bf16 %v944, %v943
    %v990 = vpack.c.bf16 %v946, %v945
    %v991 = vpack.c.bf16 %v948, %v947
    %v992 = vpack.c.bf16 %v950, %v949
    %v993 = vpack.c.bf16 %v952, %v951
    %v994 = vpack.c.bf16 %v954, %v953
    %v995 = vpack.c.bf16 %v956, %v955
    %v996 = vpack.c.bf16 %v958, %v957
    %v997 = vpack.c.bf16 %v960, %v959
    %v998 = vpack.c.bf16 %v962, %v961
    %v999 = vpack.c.bf16 %v964, %v963
    %v1000 = vpack.c.bf16 %v966, %v965
    %v1001 = vpack.c.bf16 %v968, %v967
    %v1002 = vpack.c.bf16 %v970, %v969
    %v1004 = vshrl.u32 %v971, 16
    %v1006 = vrot.slane %v1004, 7
    %v1007 = vshll.u32 %v971, 16
    %v1009 = vor.u32 %v1006, %v1007
    %v1011 = vshrl.u32 %v972, 16
    %v1013 = vrot.slane %v1011, 7
    %v1014 = vshll.u32 %v972, 16
    %v1016 = vor.u32 %v1013, %v1014
    %v1018 = vshrl.u32 %v973, 16
    %v1020 = vrot.slane %v1018, 7
    %v1021 = vshll.u32 %v973, 16
    %v1023 = vor.u32 %v1020, %v1021
    %v1025 = vshrl.u32 %v974, 16
    %v1027 = vrot.slane %v1025, 7
    %v1028 = vshll.u32 %v974, 16
    %v1030 = vor.u32 %v1027, %v1028
    %v1032 = vshrl.u32 %v975, 16
    %v1034 = vrot.slane %v1032, 7
    %v1035 = vshll.u32 %v975, 16
    %v1037 = vor.u32 %v1034, %v1035
    %v1039 = vshrl.u32 %v976, 16
    %v1041 = vrot.slane %v1039, 7
    %v1042 = vshll.u32 %v976, 16
    %v1044 = vor.u32 %v1041, %v1042
    %v1046 = vshrl.u32 %v977, 16
    %v1048 = vrot.slane %v1046, 7
    %v1049 = vshll.u32 %v977, 16
    %v1051 = vor.u32 %v1048, %v1049
    %v1053 = vshrl.u32 %v978, 16
    %v1055 = vrot.slane %v1053, 7
    %v1056 = vshll.u32 %v978, 16
    %v1058 = vor.u32 %v1055, %v1056
    %v1060 = vshrl.u32 %v979, 16
    %v1062 = vrot.slane %v1060, 7
    %v1063 = vshll.u32 %v979, 16
    %v1065 = vor.u32 %v1062, %v1063
    %v1067 = vshrl.u32 %v980, 16
    %v1069 = vrot.slane %v1067, 7
    %v1070 = vshll.u32 %v980, 16
    %v1072 = vor.u32 %v1069, %v1070
    %v1074 = vshrl.u32 %v981, 16
    %v1076 = vrot.slane %v1074, 7
    %v1077 = vshll.u32 %v981, 16
    %v1079 = vor.u32 %v1076, %v1077
    %v1081 = vshrl.u32 %v982, 16
    %v1083 = vrot.slane %v1081, 7
    %v1084 = vshll.u32 %v982, 16
    %v1086 = vor.u32 %v1083, %v1084
    %v1088 = vshrl.u32 %v983, 16
    %v1090 = vrot.slane %v1088, 7
    %v1091 = vshll.u32 %v983, 16
    %v1093 = vor.u32 %v1090, %v1091
    %v1095 = vshrl.u32 %v984, 16
    %v1097 = vrot.slane %v1095, 7
    %v1098 = vshll.u32 %v984, 16
    %v1100 = vor.u32 %v1097, %v1098
    %v1102 = vshrl.u32 %v985, 16
    %v1104 = vrot.slane %v1102, 7
    %v1105 = vshll.u32 %v985, 16
    %v1107 = vor.u32 %v1104, %v1105
    %v1109 = vshrl.u32 %v986, 16
    %v1111 = vrot.slane %v1109, 7
    %v1112 = vshll.u32 %v986, 16
    %v1114 = vor.u32 %v1111, %v1112
    %v1116 = vshrl.u32 %v987, 16
    %v1118 = vrot.slane %v1116, 7
    %v1119 = vshll.u32 %v987, 16
    %v1121 = vor.u32 %v1118, %v1119
    %v1123 = vshrl.u32 %v988, 16
    %v1125 = vrot.slane %v1123, 7
    %v1126 = vshll.u32 %v988, 16
    %v1128 = vor.u32 %v1125, %v1126
    %v1130 = vshrl.u32 %v989, 16
    %v1132 = vrot.slane %v1130, 7
    %v1133 = vshll.u32 %v989, 16
    %v1135 = vor.u32 %v1132, %v1133
    %v1137 = vshrl.u32 %v990, 16
    %v1139 = vrot.slane %v1137, 7
    %v1140 = vshll.u32 %v990, 16
    %v1142 = vor.u32 %v1139, %v1140
    %v1144 = vshrl.u32 %v991, 16
    %v1146 = vrot.slane %v1144, 7
    %v1147 = vshll.u32 %v991, 16
    %v1149 = vor.u32 %v1146, %v1147
    %v1151 = vshrl.u32 %v992, 16
    %v1153 = vrot.slane %v1151, 7
    %v1154 = vshll.u32 %v992, 16
    %v1156 = vor.u32 %v1153, %v1154
    %v1158 = vshrl.u32 %v993, 16
    %v1160 = vrot.slane %v1158, 7
    %v1161 = vshll.u32 %v993, 16
    %v1163 = vor.u32 %v1160, %v1161
    %v1165 = vshrl.u32 %v994, 16
    %v1167 = vrot.slane %v1165, 7
    %v1168 = vshll.u32 %v994, 16
    %v1170 = vor.u32 %v1167, %v1168
    %v1172 = vshrl.u32 %v995, 16
    %v1174 = vrot.slane %v1172, 7
    %v1175 = vshll.u32 %v995, 16
    %v1177 = vor.u32 %v1174, %v1175
    %v1179 = vshrl.u32 %v996, 16
    %v1181 = vrot.slane %v1179, 7
    %v1182 = vshll.u32 %v996, 16
    %v1184 = vor.u32 %v1181, %v1182
    %v1186 = vshrl.u32 %v997, 16
    %v1188 = vrot.slane %v1186, 7
    %v1189 = vshll.u32 %v997, 16
    %v1191 = vor.u32 %v1188, %v1189
    %v1193 = vshrl.u32 %v998, 16
    %v1195 = vrot.slane %v1193, 7
    %v1196 = vshll.u32 %v998, 16
    %v1198 = vor.u32 %v1195, %v1196
    %v1200 = vshrl.u32 %v999, 16
    %v1202 = vrot.slane %v1200, 7
    %v1203 = vshll.u32 %v999, 16
    %v1205 = vor.u32 %v1202, %v1203
    %v1207 = vshrl.u32 %v1000, 16
    %v1209 = vrot.slane %v1207, 7
    %v1210 = vshll.u32 %v1000, 16
    %v1212 = vor.u32 %v1209, %v1210
    %v1214 = vshrl.u32 %v1001, 16
    %v1216 = vrot.slane %v1214, 7
    %v1217 = vshll.u32 %v1001, 16
    %v1219 = vor.u32 %v1216, %v1217
    %v1221 = vshrl.u32 %v1002, 16
    %v1223 = vrot.slane %v1221, 7
    %v1224 = vshll.u32 %v1002, 16
    %v1226 = vor.u32 %v1223, %v1224
    %v1323 = vrot.slane %v971, 7
    %v1324 = vrot.slane %v972, 7
    %v1325 = vrot.slane %v973, 7
    %v1326 = vrot.slane %v974, 7
    %v1327 = vrot.slane %v975, 7
    %v1328 = vrot.slane %v976, 7
    %v1329 = vrot.slane %v977, 7
    %v1330 = vrot.slane %v978, 7
    %v1331 = vrot.slane %v979, 7
    %v1332 = vrot.slane %v980, 7
    %v1333 = vrot.slane %v981, 7
    %v1334 = vrot.slane %v982, 7
    %v1335 = vrot.slane %v983, 7
    %v1336 = vrot.slane %v984, 7
    %v1337 = vrot.slane %v985, 7
    %v1338 = vrot.slane %v986, 7
    %v1339 = vrot.slane %v987, 7
    %v1340 = vrot.slane %v988, 7
    %v1341 = vrot.slane %v989, 7
    %v1342 = vrot.slane %v990, 7
    %v1343 = vrot.slane %v991, 7
    %v1344 = vrot.slane %v992, 7
    %v1345 = vrot.slane %v993, 7
    %v1346 = vrot.slane %v994, 7
    %v1347 = vrot.slane %v995, 7
    %v1348 = vrot.slane %v996, 7
    %v1349 = vrot.slane %v997, 7
    %v1350 = vrot.slane %v998, 7
    %v1351 = vrot.slane %v999, 7
    %v1352 = vrot.slane %v1000, 7
    %v1353 = vrot.slane %v1001, 7
    %v1354 = vrot.slane %v1002, 7
    %vm1387 = vcmask 1040384
    %vm1388 = vsmask.f32 256
    %vm1389 = vmand %vm1387, %vm1388
    %v1390 = vsel %vm1389, %v971, %v1009
    %v1391 = vsel %vm1389, %v972, %v1016
    %v1392 = vsel %vm1389, %v973, %v1023
    %v1393 = vsel %vm1389, %v974, %v1030
    %v1394 = vsel %vm1389, %v975, %v1037
    %v1395 = vsel %vm1389, %v976, %v1044
    %v1396 = vsel %vm1389, %v977, %v1051
    %v1397 = vsel %vm1389, %v978, %v1058
    %v1398 = vsel %vm1389, %v979, %v1065
    %v1399 = vsel %vm1389, %v980, %v1072
    %v1400 = vsel %vm1389, %v981, %v1079
    %v1401 = vsel %vm1389, %v982, %v1086
    %v1402 = vsel %vm1389, %v983, %v1093
    %v1403 = vsel %vm1389, %v984, %v1100
    %v1404 = vsel %vm1389, %v985, %v1107
    %v1405 = vsel %vm1389, %v986, %v1114
    %v1406 = vsel %vm1389, %v987, %v1121
    %v1407 = vsel %vm1389, %v988, %v1128
    %v1408 = vsel %vm1389, %v989, %v1135
    %v1409 = vsel %vm1389, %v990, %v1142
    %v1410 = vsel %vm1389, %v991, %v1149
    %v1411 = vsel %vm1389, %v992, %v1156
    %v1412 = vsel %vm1389, %v993, %v1163
    %v1413 = vsel %vm1389, %v994, %v1170
    %v1414 = vsel %vm1389, %v995, %v1177
    %v1415 = vsel %vm1389, %v996, %v1184
    %v1416 = vsel %vm1389, %v997, %v1191
    %v1417 = vsel %vm1389, %v998, %v1198
    %v1418 = vsel %vm1389, %v999, %v1205
    %v1419 = vsel %vm1389, %v1000, %v1212
    %v1420 = vsel %vm1389, %v1001, %v1219
    %v1421 = vsel %vm1389, %v1002, %v1226
    %v1422 = vsel %vm1389, %v1006, %v1323
    %v1423 = vsel %vm1389, %v1013, %v1324
    %v1424 = vsel %vm1389, %v1020, %v1325
    %v1425 = vsel %vm1389, %v1027, %v1326
    %v1426 = vsel %vm1389, %v1034, %v1327
    %v1427 = vsel %vm1389, %v1041, %v1328
    %v1428 = vsel %vm1389, %v1048, %v1329
    %v1429 = vsel %vm1389, %v1055, %v1330
    %v1430 = vsel %vm1389, %v1062, %v1331
    %v1431 = vsel %vm1389, %v1069, %v1332
    %v1432 = vsel %vm1389, %v1076, %v1333
    %v1433 = vsel %vm1389, %v1083, %v1334
    %v1434 = vsel %vm1389, %v1090, %v1335
    %v1435 = vsel %vm1389, %v1097, %v1336
    %v1436 = vsel %vm1389, %v1104, %v1337
    %v1437 = vsel %vm1389, %v1111, %v1338
    %v1438 = vsel %vm1389, %v1118, %v1339
    %v1439 = vsel %vm1389, %v1125, %v1340
    %v1440 = vsel %vm1389, %v1132, %v1341
    %v1441 = vsel %vm1389, %v1139, %v1342
    %v1442 = vsel %vm1389, %v1146, %v1343
    %v1443 = vsel %vm1389, %v1153, %v1344
    %v1444 = vsel %vm1389, %v1160, %v1345
    %v1445 = vsel %vm1389, %v1167, %v1346
    %v1446 = vsel %vm1389, %v1174, %v1347
    %v1447 = vsel %vm1389, %v1181, %v1348
    %v1448 = vsel %vm1389, %v1188, %v1349
    %v1449 = vsel %vm1389, %v1195, %v1350
    %v1450 = vsel %vm1389, %v1202, %v1351
    %v1451 = vsel %vm1389, %v1209, %v1352
    %v1452 = vsel %vm1389, %v1216, %v1353
    %v1453 = vsel %vm1389, %v1223, %v1354
    %vm1454 = vsmask.f32 7424
    %v1456 = vshrl.u32 %v1390, 16
    %v1458 = vshll.u32 %v1390, 16
    %v1460 = vrot.slane %v1458, 1
    %v1461 = vor.u32 %v1456, %v1460
    %v1463 = vshll.u32 %v1422, 16
    %v1465 = vrot.slane %v1463, 1
    %v1466 = vsel %vm1454, %v1461, %v1465
    %v1468 = vshrl.u32 %v1391, 16
    %v1470 = vshll.u32 %v1391, 16
    %v1472 = vrot.slane %v1470, 1
    %v1473 = vor.u32 %v1468, %v1472
    %v1475 = vshll.u32 %v1423, 16
    %v1477 = vrot.slane %v1475, 1
    %v1478 = vsel %vm1454, %v1473, %v1477
    %v1480 = vshrl.u32 %v1392, 16
    %v1482 = vshll.u32 %v1392, 16
    %v1484 = vrot.slane %v1482, 1
    %v1485 = vor.u32 %v1480, %v1484
    %v1487 = vshll.u32 %v1424, 16
    %v1489 = vrot.slane %v1487, 1
    %v1490 = vsel %vm1454, %v1485, %v1489
    %v1492 = vshrl.u32 %v1393, 16
    %v1494 = vshll.u32 %v1393, 16
    %v1496 = vrot.slane %v1494, 1
    %v1497 = vor.u32 %v1492, %v1496
    %v1499 = vshll.u32 %v1425, 16
    %v1501 = vrot.slane %v1499, 1
    %v1502 = vsel %vm1454, %v1497, %v1501
    %v1504 = vshrl.u32 %v1394, 16
    %v1506 = vshll.u32 %v1394, 16
    %v1508 = vrot.slane %v1506, 1
    %v1509 = vor.u32 %v1504, %v1508
    %v1511 = vshll.u32 %v1426, 16
    %v1513 = vrot.slane %v1511, 1
    %v1514 = vsel %vm1454, %v1509, %v1513
    %v1516 = vshrl.u32 %v1395, 16
    %v1518 = vshll.u32 %v1395, 16
    %v1520 = vrot.slane %v1518, 1
    %v1521 = vor.u32 %v1516, %v1520
    %v1523 = vshll.u32 %v1427, 16
    %v1525 = vrot.slane %v1523, 1
    %v1526 = vsel %vm1454, %v1521, %v1525
    %v1528 = vshrl.u32 %v1396, 16
    %v1530 = vshll.u32 %v1396, 16
    %v1532 = vrot.slane %v1530, 1
    %v1533 = vor.u32 %v1528, %v1532
    %v1535 = vshll.u32 %v1428, 16
    %v1537 = vrot.slane %v1535, 1
    %v1538 = vsel %vm1454, %v1533, %v1537
    %v1540 = vshrl.u32 %v1397, 16
    %v1542 = vshll.u32 %v1397, 16
    %v1544 = vrot.slane %v1542, 1
    %v1545 = vor.u32 %v1540, %v1544
    %v1547 = vshll.u32 %v1429, 16
    %v1549 = vrot.slane %v1547, 1
    %v1550 = vsel %vm1454, %v1545, %v1549
    %v1552 = vshrl.u32 %v1398, 16
    %v1554 = vshll.u32 %v1398, 16
    %v1556 = vrot.slane %v1554, 1
    %v1557 = vor.u32 %v1552, %v1556
    %v1559 = vshll.u32 %v1430, 16
    %v1561 = vrot.slane %v1559, 1
    %v1562 = vsel %vm1454, %v1557, %v1561
    %v1564 = vshrl.u32 %v1399, 16
    %v1566 = vshll.u32 %v1399, 16
    %v1568 = vrot.slane %v1566, 1
    %v1569 = vor.u32 %v1564, %v1568
    %v1571 = vshll.u32 %v1431, 16
    %v1573 = vrot.slane %v1571, 1
    %v1574 = vsel %vm1454, %v1569, %v1573
    %v1576 = vshrl.u32 %v1400, 16
    %v1578 = vshll.u32 %v1400, 16
    %v1580 = vrot.slane %v1578, 1
    %v1581 = vor.u32 %v1576, %v1580
    %v1583 = vshll.u32 %v1432, 16
    %v1585 = vrot.slane %v1583, 1
    %v1586 = vsel %vm1454, %v1581, %v1585
    %v1588 = vshrl.u32 %v1401, 16
    %v1590 = vshll.u32 %v1401, 16
    %v1592 = vrot.slane %v1590, 1
    %v1593 = vor.u32 %v1588, %v1592
    %v1595 = vshll.u32 %v1433, 16
    %v1597 = vrot.slane %v1595, 1
    %v1598 = vsel %vm1454, %v1593, %v1597
    %v1600 = vshrl.u32 %v1402, 16
    %v1602 = vshll.u32 %v1402, 16
    %v1604 = vrot.slane %v1602, 1
    %v1605 = vor.u32 %v1600, %v1604
    %v1607 = vshll.u32 %v1434, 16
    %v1609 = vrot.slane %v1607, 1
    %v1610 = vsel %vm1454, %v1605, %v1609
    %v1612 = vshrl.u32 %v1403, 16
    %v1614 = vshll.u32 %v1403, 16
    %v1616 = vrot.slane %v1614, 1
    %v1617 = vor.u32 %v1612, %v1616
    %v1619 = vshll.u32 %v1435, 16
    %v1621 = vrot.slane %v1619, 1
    %v1622 = vsel %vm1454, %v1617, %v1621
    %v1624 = vshrl.u32 %v1404, 16
    %v1626 = vshll.u32 %v1404, 16
    %v1628 = vrot.slane %v1626, 1
    %v1629 = vor.u32 %v1624, %v1628
    %v1631 = vshll.u32 %v1436, 16
    %v1633 = vrot.slane %v1631, 1
    %v1634 = vsel %vm1454, %v1629, %v1633
    %v1636 = vshrl.u32 %v1406, 16
    %v1638 = vshll.u32 %v1406, 16
    %v1640 = vrot.slane %v1638, 1
    %v1641 = vor.u32 %v1636, %v1640
    %v1643 = vshll.u32 %v1438, 16
    %v1645 = vrot.slane %v1643, 1
    %v1646 = vsel %vm1454, %v1641, %v1645
    %v1648 = vshrl.u32 %v1407, 16
    %v1650 = vshll.u32 %v1407, 16
    %v1652 = vrot.slane %v1650, 1
    %v1653 = vor.u32 %v1648, %v1652
    %v1655 = vshll.u32 %v1439, 16
    %v1657 = vrot.slane %v1655, 1
    %v1658 = vsel %vm1454, %v1653, %v1657
    %v1660 = vshrl.u32 %v1408, 16
    %v1662 = vshll.u32 %v1408, 16
    %v1664 = vrot.slane %v1662, 1
    %v1665 = vor.u32 %v1660, %v1664
    %v1667 = vshll.u32 %v1440, 16
    %v1669 = vrot.slane %v1667, 1
    %v1670 = vsel %vm1454, %v1665, %v1669
    %v1672 = vshrl.u32 %v1409, 16
    %v1674 = vshll.u32 %v1409, 16
    %v1676 = vrot.slane %v1674, 1
    %v1677 = vor.u32 %v1672, %v1676
    %v1679 = vshll.u32 %v1441, 16
    %v1681 = vrot.slane %v1679, 1
    %v1682 = vsel %vm1454, %v1677, %v1681
    %v1684 = vshrl.u32 %v1410, 16
    %v1686 = vshll.u32 %v1410, 16
    %v1688 = vrot.slane %v1686, 1
    %v1689 = vor.u32 %v1684, %v1688
    %v1691 = vshll.u32 %v1442, 16
    %v1693 = vrot.slane %v1691, 1
    %v1694 = vsel %vm1454, %v1689, %v1693
    %v1696 = vshrl.u32 %v1411, 16
    %v1698 = vshll.u32 %v1411, 16
    %v1700 = vrot.slane %v1698, 1
    %v1701 = vor.u32 %v1696, %v1700
    %v1703 = vshll.u32 %v1443, 16
    %v1705 = vrot.slane %v1703, 1
    %v1706 = vsel %vm1454, %v1701, %v1705
    %v1708 = vshrl.u32 %v1412, 16
    %v1710 = vshll.u32 %v1412, 16
    %v1712 = vrot.slane %v1710, 1
    %v1713 = vor.u32 %v1708, %v1712
    %v1715 = vshll.u32 %v1444, 16
    %v1717 = vrot.slane %v1715, 1
    %v1718 = vsel %vm1454, %v1713, %v1717
    %v1720 = vshrl.u32 %v1413, 16
    %v1722 = vshll.u32 %v1413, 16
    %v1724 = vrot.slane %v1722, 1
    %v1725 = vor.u32 %v1720, %v1724
    %v1727 = vshll.u32 %v1445, 16
    %v1729 = vrot.slane %v1727, 1
    %v1730 = vsel %vm1454, %v1725, %v1729
    %v1732 = vshrl.u32 %v1414, 16
    %v1734 = vshll.u32 %v1414, 16
    %v1736 = vrot.slane %v1734, 1
    %v1737 = vor.u32 %v1732, %v1736
    %v1739 = vshll.u32 %v1446, 16
    %v1741 = vrot.slane %v1739, 1
    %v1742 = vsel %vm1454, %v1737, %v1741
    %v1744 = vshrl.u32 %v1415, 16
    %v1746 = vshll.u32 %v1415, 16
    %v1748 = vrot.slane %v1746, 1
    %v1749 = vor.u32 %v1744, %v1748
    %v1751 = vshll.u32 %v1447, 16
    %v1753 = vrot.slane %v1751, 1
    %v1754 = vsel %vm1454, %v1749, %v1753
    %v1756 = vshrl.u32 %v1416, 16
    %v1758 = vshll.u32 %v1416, 16
    %v1760 = vrot.slane %v1758, 1
    %v1761 = vor.u32 %v1756, %v1760
    %v1763 = vshll.u32 %v1448, 16
    %v1765 = vrot.slane %v1763, 1
    %v1766 = vsel %vm1454, %v1761, %v1765
    %v1768 = vshrl.u32 %v1417, 16
    %v1770 = vshll.u32 %v1417, 16
    %v1772 = vrot.slane %v1770, 1
    %v1773 = vor.u32 %v1768, %v1772
    %v1775 = vshll.u32 %v1449, 16
    %v1777 = vrot.slane %v1775, 1
    %v1778 = vsel %vm1454, %v1773, %v1777
    %v1780 = vshrl.u32 %v1418, 16
    %v1782 = vshll.u32 %v1418, 16
    %v1784 = vrot.slane %v1782, 1
    %v1785 = vor.u32 %v1780, %v1784
    %v1787 = vshll.u32 %v1450, 16
    %v1789 = vrot.slane %v1787, 1
    %v1790 = vsel %vm1454, %v1785, %v1789
    %v1792 = vshrl.u32 %v1419, 16
    %v1794 = vshll.u32 %v1419, 16
    %v1796 = vrot.slane %v1794, 1
    %v1797 = vor.u32 %v1792, %v1796
    %v1799 = vshll.u32 %v1451, 16
    %v1801 = vrot.slane %v1799, 1
    %v1802 = vsel %vm1454, %v1797, %v1801
    %v1804 = vshrl.u32 %v1420, 16
    %v1806 = vshll.u32 %v1420, 16
    %v1808 = vrot.slane %v1806, 1
    %v1809 = vor.u32 %v1804, %v1808
    %v1811 = vshll.u32 %v1452, 16
    %v1813 = vrot.slane %v1811, 1
    %v1814 = vsel %vm1454, %v1809, %v1813
    %1815 = vrot.lane.b32.xlu0 %v1466, 8
    %v1816 = vpop.permute.xlu0 %1815
    %1817 = vrot.lane.b32.xlu0 %v1478, 8
    %v1818 = vpop.permute.xlu0 %1817
    %1819 = vrot.lane.b32.xlu0 %v1490, 8
    %v1820 = vpop.permute.xlu0 %1819
    %1821 = vrot.lane.b32.xlu0 %v1502, 8
    %v1822 = vpop.permute.xlu0 %1821
    %1823 = vrot.lane.b32.xlu0 %v1514, 8
    %v1824 = vpop.permute.xlu0 %1823
    %1825 = vrot.lane.b32.xlu0 %v1526, 8
    %v1826 = vpop.permute.xlu0 %1825
    %1827 = vrot.lane.b32.xlu0 %v1538, 8
    %v1828 = vpop.permute.xlu0 %1827
    %1829 = vrot.lane.b32.xlu0 %v1550, 8
    %v1830 = vpop.permute.xlu0 %1829
    %1831 = vrot.lane.b32.xlu0 %v1562, 8
    %v1832 = vpop.permute.xlu0 %1831
    %1833 = vrot.lane.b32.xlu0 %v1574, 8
    %v1834 = vpop.permute.xlu0 %1833
    %1835 = vrot.lane.b32.xlu0 %v1586, 8
    %v1836 = vpop.permute.xlu0 %1835
    %1837 = vrot.lane.b32.xlu0 %v1598, 8
    %v1838 = vpop.permute.xlu0 %1837
    %1839 = vrot.lane.b32.xlu0 %v1610, 8
    %v1840 = vpop.permute.xlu0 %1839
    %1841 = vrot.lane.b32.xlu0 %v1622, 8
    %v1842 = vpop.permute.xlu0 %1841
    %1843 = vrot.lane.b32.xlu0 %v1634, 8
    %v1844 = vpop.permute.xlu0 %1843
    %1845 = vrot.lane.b32.xlu0 %v1646, 8
    %v1846 = vpop.permute.xlu0 %1845
    %1847 = vrot.lane.b32.xlu0 %v1658, 8
    %v1848 = vpop.permute.xlu0 %1847
    %1849 = vrot.lane.b32.xlu0 %v1670, 8
    %v1850 = vpop.permute.xlu0 %1849
    %1851 = vrot.lane.b32.xlu0 %v1682, 8
    %v1852 = vpop.permute.xlu0 %1851
    %1853 = vrot.lane.b32.xlu0 %v1694, 8
    %v1854 = vpop.permute.xlu0 %1853
    %1855 = vrot.lane.b32.xlu0 %v1706, 8
    %v1856 = vpop.permute.xlu0 %1855
    %1857 = vrot.lane.b32.xlu0 %v1718, 8
    %v1858 = vpop.permute.xlu0 %1857
    %1859 = vrot.lane.b32.xlu0 %v1730, 8
    %v1860 = vpop.permute.xlu0 %1859
    %1861 = vrot.lane.b32.xlu0 %v1742, 8
    %v1862 = vpop.permute.xlu0 %1861
    %1863 = vrot.lane.b32.xlu0 %v1754, 8
    %v1864 = vpop.permute.xlu0 %1863
    %1865 = vrot.lane.b32.xlu0 %v1766, 8
    %v1866 = vpop.permute.xlu0 %1865
    %1867 = vrot.lane.b32.xlu0 %v1778, 8
    %v1868 = vpop.permute.xlu0 %1867
    %1869 = vrot.lane.b32.xlu0 %v1790, 8
    %v1870 = vpop.permute.xlu0 %1869
    %1871 = vrot.lane.b32.xlu0 %v1802, 8
    %v1872 = vpop.permute.xlu0 %1871
    %1873 = vrot.lane.b32.xlu0 %v1814, 8
    %v1874 = vpop.permute.xlu0 %1873
    %vm1935 = vcmask 1046528
    %v1936 = vrot.slane %v1390, 1
    %v1937 = vrot.slane %v1422, 1
    %v1938 = vsel %vm1935, %v1936, %v1937
    %v1939 = vrot.slane %v1391, 1
    %v1940 = vrot.slane %v1423, 1
    %v1941 = vsel %vm1935, %v1939, %v1940
    %v1942 = vrot.slane %v1392, 1
    %v1943 = vrot.slane %v1424, 1
    %v1944 = vsel %vm1935, %v1942, %v1943
    %v1945 = vrot.slane %v1393, 1
    %v1946 = vrot.slane %v1425, 1
    %v1947 = vsel %vm1935, %v1945, %v1946
    %v1948 = vrot.slane %v1394, 1
    %v1949 = vrot.slane %v1426, 1
    %v1950 = vsel %vm1935, %v1948, %v1949
    %v1951 = vrot.slane %v1395, 1
    %v1952 = vrot.slane %v1427, 1
    %v1953 = vsel %vm1935, %v1951, %v1952
    %v1954 = vrot.slane %v1396, 1
    %v1955 = vrot.slane %v1428, 1
    %v1956 = vsel %vm1935, %v1954, %v1955
    %v1957 = vrot.slane %v1397, 1
    %v1958 = vrot.slane %v1429, 1
    %v1959 = vsel %vm1935, %v1957, %v1958
    %v1960 = vrot.slane %v1398, 1
    %v1961 = vrot.slane %v1430, 1
    %v1962 = vsel %vm1935, %v1960, %v1961
    %v1963 = vrot.slane %v1399, 1
    %v1964 = vrot.slane %v1431, 1
    %v1965 = vsel %vm1935, %v1963, %v1964
    %v1966 = vrot.slane %v1400, 1
    %v1967 = vrot.slane %v1432, 1
    %v1968 = vsel %vm1935, %v1966, %v1967
    %v1969 = vrot.slane %v1401, 1
    %v1970 = vrot.slane %v1433, 1
    %v1971 = vsel %vm1935, %v1969, %v1970
    %v1972 = vrot.slane %v1402, 1
    %v1973 = vrot.slane %v1434, 1
    %v1974 = vsel %vm1935, %v1972, %v1973
    %v1975 = vrot.slane %v1403, 1
    %v1976 = vrot.slane %v1435, 1
    %v1977 = vsel %vm1935, %v1975, %v1976
    %v1978 = vrot.slane %v1404, 1
    %v1979 = vrot.slane %v1436, 1
    %v1980 = vsel %vm1935, %v1978, %v1979
    %v1981 = vrot.slane %v1406, 1
    %v1982 = vrot.slane %v1438, 1
    %v1983 = vsel %vm1935, %v1981, %v1982
    %v1984 = vrot.slane %v1407, 1
    %v1985 = vrot.slane %v1439, 1
    %v1986 = vsel %vm1935, %v1984, %v1985
    %v1987 = vrot.slane %v1408, 1
    %v1988 = vrot.slane %v1440, 1
    %v1989 = vsel %vm1935, %v1987, %v1988
    %v1990 = vrot.slane %v1409, 1
    %v1991 = vrot.slane %v1441, 1
    %v1992 = vsel %vm1935, %v1990, %v1991
    %v1993 = vrot.slane %v1410, 1
    %v1994 = vrot.slane %v1442, 1
    %v1995 = vsel %vm1935, %v1993, %v1994
    %v1996 = vrot.slane %v1411, 1
    %v1997 = vrot.slane %v1443, 1
    %v1998 = vsel %vm1935, %v1996, %v1997
    %v1999 = vrot.slane %v1412, 1
    %v2000 = vrot.slane %v1444, 1
    %v2001 = vsel %vm1935, %v1999, %v2000
    %v2002 = vrot.slane %v1413, 1
    %v2003 = vrot.slane %v1445, 1
    %v2004 = vsel %vm1935, %v2002, %v2003
    %v2005 = vrot.slane %v1414, 1
    %v2006 = vrot.slane %v1446, 1
    %v2007 = vsel %vm1935, %v2005, %v2006
    %v2008 = vrot.slane %v1415, 1
    %v2009 = vrot.slane %v1447, 1
    %v2010 = vsel %vm1935, %v2008, %v2009
    %v2011 = vrot.slane %v1416, 1
    %v2012 = vrot.slane %v1448, 1
    %v2013 = vsel %vm1935, %v2011, %v2012
    %v2014 = vrot.slane %v1417, 1
    %v2015 = vrot.slane %v1449, 1
    %v2016 = vsel %vm1935, %v2014, %v2015
    %v2017 = vrot.slane %v1418, 1
    %v2018 = vrot.slane %v1450, 1
    %v2019 = vsel %vm1935, %v2017, %v2018
    %v2020 = vrot.slane %v1419, 1
    %v2021 = vrot.slane %v1451, 1
    %v2022 = vsel %vm1935, %v2020, %v2021
    %v2023 = vrot.slane %v1420, 1
    %v2024 = vrot.slane %v1452, 1
    %v2025 = vsel %vm1935, %v2023, %v2024
    %2026 = vrot.lane.b32.xlu0 %v1938, 16
    %v2027 = vpop.permute.xlu0 %2026
    %2028 = vrot.lane.b32.xlu0 %v1941, 16
    %v2029 = vpop.permute.xlu0 %2028
    %2030 = vrot.lane.b32.xlu0 %v1944, 16
    %v2031 = vpop.permute.xlu0 %2030
    %2032 = vrot.lane.b32.xlu0 %v1947, 16
    %v2033 = vpop.permute.xlu0 %2032
    %2034 = vrot.lane.b32.xlu0 %v1950, 16
    %v2035 = vpop.permute.xlu0 %2034
    %2036 = vrot.lane.b32.xlu0 %v1953, 16
    %v2037 = vpop.permute.xlu0 %2036
    %2038 = vrot.lane.b32.xlu0 %v1956, 16
    %v2039 = vpop.permute.xlu0 %2038
    %2040 = vrot.lane.b32.xlu0 %v1959, 16
    %v2041 = vpop.permute.xlu0 %2040
    %2042 = vrot.lane.b32.xlu0 %v1962, 16
    %v2043 = vpop.permute.xlu0 %2042
    %2044 = vrot.lane.b32.xlu0 %v1965, 16
    %v2045 = vpop.permute.xlu0 %2044
    %2046 = vrot.lane.b32.xlu0 %v1968, 16
    %v2047 = vpop.permute.xlu0 %2046
    %2048 = vrot.lane.b32.xlu0 %v1971, 16
    %v2049 = vpop.permute.xlu0 %2048
    %2050 = vrot.lane.b32.xlu0 %v1974, 16
    %v2051 = vpop.permute.xlu0 %2050
    %2052 = vrot.lane.b32.xlu0 %v1977, 16
    %v2053 = vpop.permute.xlu0 %2052
    %2054 = vrot.lane.b32.xlu0 %v1980, 16
    %v2055 = vpop.permute.xlu0 %2054
    %2056 = vrot.lane.b32.xlu0 %v1983, 16
    %v2057 = vpop.permute.xlu0 %2056
    %2058 = vrot.lane.b32.xlu0 %v1986, 16
    %v2059 = vpop.permute.xlu0 %2058
    %2060 = vrot.lane.b32.xlu0 %v1989, 16
    %v2061 = vpop.permute.xlu0 %2060
    %2062 = vrot.lane.b32.xlu0 %v1992, 16
    %v2063 = vpop.permute.xlu0 %2062
    %2064 = vrot.lane.b32.xlu0 %v1995, 16
    %v2065 = vpop.permute.xlu0 %2064
    %2066 = vrot.lane.b32.xlu0 %v1998, 16
    %v2067 = vpop.permute.xlu0 %2066
    %2068 = vrot.lane.b32.xlu0 %v2001, 16
    %v2069 = vpop.permute.xlu0 %2068
    %2070 = vrot.lane.b32.xlu0 %v2004, 16
    %v2071 = vpop.permute.xlu0 %2070
    %2072 = vrot.lane.b32.xlu0 %v2007, 16
    %v2073 = vpop.permute.xlu0 %2072
    %2074 = vrot.lane.b32.xlu0 %v2010, 16
    %v2075 = vpop.permute.xlu0 %2074
    %2076 = vrot.lane.b32.xlu0 %v2013, 16
    %v2077 = vpop.permute.xlu0 %2076
    %2078 = vrot.lane.b32.xlu0 %v2016, 16
    %v2079 = vpop.permute.xlu0 %2078
    %2080 = vrot.lane.b32.xlu0 %v2019, 16
    %v2081 = vpop.permute.xlu0 %2080
    %2082 = vrot.lane.b32.xlu0 %v2022, 16
    %v2083 = vpop.permute.xlu0 %2082
    %2084 = vrot.lane.b32.xlu0 %v2025, 16
    %v2085 = vpop.permute.xlu0 %2084
    %2088 = vrot.lane.b32.xlu0 %v1390, 24
    %v2089 = vpop.permute.xlu0 %2088
    %2090 = vrot.lane.b32.xlu0 %v1391, 24
    %v2091 = vpop.permute.xlu0 %2090
    %2092 = vrot.lane.b32.xlu0 %v1392, 24
    %v2093 = vpop.permute.xlu0 %2092
    %2094 = vrot.lane.b32.xlu0 %v1393, 24
    %v2095 = vpop.permute.xlu0 %2094
    %2096 = vrot.lane.b32.xlu0 %v1394, 24
    %v2097 = vpop.permute.xlu0 %2096
    %2098 = vrot.lane.b32.xlu0 %v1395, 24
    %v2099 = vpop.permute.xlu0 %2098
    %2100 = vrot.lane.b32.xlu0 %v1396, 24
    %v2101 = vpop.permute.xlu0 %2100
    %2102 = vrot.lane.b32.xlu0 %v1397, 24
    %v2103 = vpop.permute.xlu0 %2102
    %2104 = vrot.lane.b32.xlu0 %v1398, 24
    %v2105 = vpop.permute.xlu0 %2104
    %2106 = vrot.lane.b32.xlu0 %v1399, 24
    %v2107 = vpop.permute.xlu0 %2106
    %2108 = vrot.lane.b32.xlu0 %v1400, 24
    %v2109 = vpop.permute.xlu0 %2108
    %2110 = vrot.lane.b32.xlu0 %v1401, 24
    %v2111 = vpop.permute.xlu0 %2110
    %2112 = vrot.lane.b32.xlu0 %v1402, 24
    %v2113 = vpop.permute.xlu0 %2112
    %2114 = vrot.lane.b32.xlu0 %v1403, 24
    %v2115 = vpop.permute.xlu0 %2114
    %2116 = vrot.lane.b32.xlu0 %v1404, 24
    %v2117 = vpop.permute.xlu0 %2116
    %2118 = vrot.lane.b32.xlu0 %v1405, 24
    %v2119 = vpop.permute.xlu0 %2118
    %2120 = vrot.lane.b32.xlu0 %v1406, 24
    %v2121 = vpop.permute.xlu0 %2120
    %2122 = vrot.lane.b32.xlu0 %v1407, 24
    %v2123 = vpop.permute.xlu0 %2122
    %2124 = vrot.lane.b32.xlu0 %v1408, 24
    %v2125 = vpop.permute.xlu0 %2124
    %2126 = vrot.lane.b32.xlu0 %v1409, 24
    %v2127 = vpop.permute.xlu0 %2126
    %2128 = vrot.lane.b32.xlu0 %v1410, 24
    %v2129 = vpop.permute.xlu0 %2128
    %2130 = vrot.lane.b32.xlu0 %v1411, 24
    %v2131 = vpop.permute.xlu0 %2130
    %2132 = vrot.lane.b32.xlu0 %v1412, 24
    %v2133 = vpop.permute.xlu0 %2132
    %2134 = vrot.lane.b32.xlu0 %v1413, 24
    %v2135 = vpop.permute.xlu0 %2134
    %2136 = vrot.lane.b32.xlu0 %v1414, 24
    %v2137 = vpop.permute.xlu0 %2136
    %2138 = vrot.lane.b32.xlu0 %v1415, 24
    %v2139 = vpop.permute.xlu0 %2138
    %2140 = vrot.lane.b32.xlu0 %v1416, 24
    %v2141 = vpop.permute.xlu0 %2140
    %2142 = vrot.lane.b32.xlu0 %v1417, 24
    %v2143 = vpop.permute.xlu0 %2142
    %2144 = vrot.lane.b32.xlu0 %v1418, 24
    %v2145 = vpop.permute.xlu0 %2144
    %2146 = vrot.lane.b32.xlu0 %v1419, 24
    %v2147 = vpop.permute.xlu0 %2146
    %2148 = vrot.lane.b32.xlu0 %v1420, 24
    %v2149 = vpop.permute.xlu0 %2148
    %2150 = vrot.lane.b32.xlu0 %v1421, 24
    %v2151 = vpop.permute.xlu0 %2150
    %v2153 = vshrl.u32 %v1405, 16
    %v2155 = vshll.u32 %v1405, 16
    %v2157 = vrot.slane %v2155, 1
    %v2158 = vor.u32 %v2153, %v2157
    %v2160 = vshll.u32 %v1437, 16
    %v2162 = vrot.slane %v2160, 1
    %v2163 = vsel %vm1454, %v2158, %v2162
    %v2165 = vshrl.u32 %v1421, 16
    %v2167 = vshll.u32 %v1421, 16
    %v2169 = vrot.slane %v2167, 1
    %v2170 = vor.u32 %v2165, %v2169
    %v2172 = vshll.u32 %v1453, 16
    %v2174 = vrot.slane %v2172, 1
    %v2175 = vsel %vm1454, %v2170, %v2174
    %2176 = vrot.lane.b32.xlu0 %v1466, 32
    %v2177 = vpop.permute.xlu0 %2176
    %2178 = vrot.lane.b32.xlu0 %v1478, 32
    %v2179 = vpop.permute.xlu0 %2178
    %2180 = vrot.lane.b32.xlu0 %v1490, 32
    %v2181 = vpop.permute.xlu0 %2180
    %2182 = vrot.lane.b32.xlu0 %v1502, 32
    %v2183 = vpop.permute.xlu0 %2182
    %2184 = vrot.lane.b32.xlu0 %v1514, 32
    %v2185 = vpop.permute.xlu0 %2184
    %2186 = vrot.lane.b32.xlu0 %v1526, 32
    %v2187 = vpop.permute.xlu0 %2186
    %2188 = vrot.lane.b32.xlu0 %v1538, 32
    %v2189 = vpop.permute.xlu0 %2188
    %2190 = vrot.lane.b32.xlu0 %v1550, 32
    %v2191 = vpop.permute.xlu0 %2190
    %2192 = vrot.lane.b32.xlu0 %v1562, 32
    %v2193 = vpop.permute.xlu0 %2192
    %2194 = vrot.lane.b32.xlu0 %v1574, 32
    %v2195 = vpop.permute.xlu0 %2194
    %2196 = vrot.lane.b32.xlu0 %v1586, 32
    %v2197 = vpop.permute.xlu0 %2196
    %2198 = vrot.lane.b32.xlu0 %v1598, 32
    %v2199 = vpop.permute.xlu0 %2198
    %2200 = vrot.lane.b32.xlu0 %v1610, 32
    %v2201 = vpop.permute.xlu0 %2200
    %2202 = vrot.lane.b32.xlu0 %v1622, 32
    %v2203 = vpop.permute.xlu0 %2202
    %2204 = vrot.lane.b32.xlu0 %v1634, 32
    %v2205 = vpop.permute.xlu0 %2204
    %2206 = vrot.lane.b32.xlu0 %v2163, 32
    %v2207 = vpop.permute.xlu0 %2206
    %2208 = vrot.lane.b32.xlu0 %v1646, 32
    %v2209 = vpop.permute.xlu0 %2208
    %2210 = vrot.lane.b32.xlu0 %v1658, 32
    %v2211 = vpop.permute.xlu0 %2210
    %2212 = vrot.lane.b32.xlu0 %v1670, 32
    %v2213 = vpop.permute.xlu0 %2212
    %2214 = vrot.lane.b32.xlu0 %v1682, 32
    %v2215 = vpop.permute.xlu0 %2214
    %2216 = vrot.lane.b32.xlu0 %v1694, 32
    %v2217 = vpop.permute.xlu0 %2216
    %2218 = vrot.lane.b32.xlu0 %v1706, 32
    %v2219 = vpop.permute.xlu0 %2218
    %2220 = vrot.lane.b32.xlu0 %v1718, 32
    %v2221 = vpop.permute.xlu0 %2220
    %2222 = vrot.lane.b32.xlu0 %v1730, 32
    %v2223 = vpop.permute.xlu0 %2222
    %2224 = vrot.lane.b32.xlu0 %v1742, 32
    %v2225 = vpop.permute.xlu0 %2224
    %2226 = vrot.lane.b32.xlu0 %v1754, 32
    %v2227 = vpop.permute.xlu0 %2226
    %2228 = vrot.lane.b32.xlu0 %v1766, 32
    %v2229 = vpop.permute.xlu0 %2228
    %2230 = vrot.lane.b32.xlu0 %v1778, 32
    %v2231 = vpop.permute.xlu0 %2230
    %2232 = vrot.lane.b32.xlu0 %v1790, 32
    %v2233 = vpop.permute.xlu0 %2232
    %2234 = vrot.lane.b32.xlu0 %v1802, 32
    %v2235 = vpop.permute.xlu0 %2234
    %2236 = vrot.lane.b32.xlu0 %v1814, 32
    %v2237 = vpop.permute.xlu0 %2236
    %2238 = vrot.lane.b32.xlu0 %v2175, 32
    %v2239 = vpop.permute.xlu0 %2238
    %v2242 = vrot.slane %v1405, 1
    %v2243 = vrot.slane %v1437, 1
    %v2244 = vsel %vm1935, %v2242, %v2243
    %v2245 = vrot.slane %v1421, 1
    %v2246 = vrot.slane %v1453, 1
    %v2247 = vsel %vm1935, %v2245, %v2246
    %2248 = vrot.lane.b32.xlu0 %v1938, 40
    %v2249 = vpop.permute.xlu0 %2248
    %2250 = vrot.lane.b32.xlu0 %v1941, 40
    %v2251 = vpop.permute.xlu0 %2250
    %2252 = vrot.lane.b32.xlu0 %v1944, 40
    %v2253 = vpop.permute.xlu0 %2252
    %2254 = vrot.lane.b32.xlu0 %v1947, 40
    %v2255 = vpop.permute.xlu0 %2254
    %2256 = vrot.lane.b32.xlu0 %v1950, 40
    %v2257 = vpop.permute.xlu0 %2256
    %2258 = vrot.lane.b32.xlu0 %v1953, 40
    %v2259 = vpop.permute.xlu0 %2258
    %2260 = vrot.lane.b32.xlu0 %v1956, 40
    %v2261 = vpop.permute.xlu0 %2260
    %2262 = vrot.lane.b32.xlu0 %v1959, 40
    %v2263 = vpop.permute.xlu0 %2262
    %2264 = vrot.lane.b32.xlu0 %v1962, 40
    %v2265 = vpop.permute.xlu0 %2264
    %2266 = vrot.lane.b32.xlu0 %v1965, 40
    %v2267 = vpop.permute.xlu0 %2266
    %2268 = vrot.lane.b32.xlu0 %v1968, 40
    %v2269 = vpop.permute.xlu0 %2268
    %2270 = vrot.lane.b32.xlu0 %v1971, 40
    %v2271 = vpop.permute.xlu0 %2270
    %2272 = vrot.lane.b32.xlu0 %v1974, 40
    %v2273 = vpop.permute.xlu0 %2272
    %2274 = vrot.lane.b32.xlu0 %v1977, 40
    %v2275 = vpop.permute.xlu0 %2274
    %2276 = vrot.lane.b32.xlu0 %v1980, 40
    %v2277 = vpop.permute.xlu0 %2276
    %2278 = vrot.lane.b32.xlu0 %v2244, 40
    %v2279 = vpop.permute.xlu0 %2278
    %2280 = vrot.lane.b32.xlu0 %v1983, 40
    %v2281 = vpop.permute.xlu0 %2280
    %2282 = vrot.lane.b32.xlu0 %v1986, 40
    %v2283 = vpop.permute.xlu0 %2282
    %2284 = vrot.lane.b32.xlu0 %v1989, 40
    %v2285 = vpop.permute.xlu0 %2284
    %2286 = vrot.lane.b32.xlu0 %v1992, 40
    %v2287 = vpop.permute.xlu0 %2286
    %2288 = vrot.lane.b32.xlu0 %v1995, 40
    %v2289 = vpop.permute.xlu0 %2288
    %2290 = vrot.lane.b32.xlu0 %v1998, 40
    %v2291 = vpop.permute.xlu0 %2290
    %2292 = vrot.lane.b32.xlu0 %v2001, 40
    %v2293 = vpop.permute.xlu0 %2292
    %2294 = vrot.lane.b32.xlu0 %v2004, 40
    %v2295 = vpop.permute.xlu0 %2294
    %2296 = vrot.lane.b32.xlu0 %v2007, 40
    %v2297 = vpop.permute.xlu0 %2296
    %2298 = vrot.lane.b32.xlu0 %v2010, 40
    %v2299 = vpop.permute.xlu0 %2298
    %2300 = vrot.lane.b32.xlu0 %v2013, 40
    %v2301 = vpop.permute.xlu0 %2300
    %2302 = vrot.lane.b32.xlu0 %v2016, 40
    %v2303 = vpop.permute.xlu0 %2302
    %2304 = vrot.lane.b32.xlu0 %v2019, 40
    %v2305 = vpop.permute.xlu0 %2304
    %2306 = vrot.lane.b32.xlu0 %v2022, 40
    %v2307 = vpop.permute.xlu0 %2306
    %2308 = vrot.lane.b32.xlu0 %v2025, 40
    %v2309 = vpop.permute.xlu0 %2308
    %2310 = vrot.lane.b32.xlu0 %v2247, 40
    %v2311 = vpop.permute.xlu0 %2310
    %2312 = vrot.lane.b32.xlu0 %v1391, 48
    %v2313 = vpop.permute.xlu0 %2312
    %2314 = vrot.lane.b32.xlu0 %v1392, 48
    %v2315 = vpop.permute.xlu0 %2314
    %2316 = vrot.lane.b32.xlu0 %v1393, 48
    %v2317 = vpop.permute.xlu0 %2316
    %2318 = vrot.lane.b32.xlu0 %v1394, 48
    %v2319 = vpop.permute.xlu0 %2318
    %2320 = vrot.lane.b32.xlu0 %v1395, 48
    %v2321 = vpop.permute.xlu0 %2320
    %2322 = vrot.lane.b32.xlu0 %v1396, 48
    %v2323 = vpop.permute.xlu0 %2322
    %2324 = vrot.lane.b32.xlu0 %v1397, 48
    %v2325 = vpop.permute.xlu0 %2324
    %2326 = vrot.lane.b32.xlu0 %v1398, 48
    %v2327 = vpop.permute.xlu0 %2326
    %2328 = vrot.lane.b32.xlu0 %v1399, 48
    %v2329 = vpop.permute.xlu0 %2328
    %2330 = vrot.lane.b32.xlu0 %v1400, 48
    %v2331 = vpop.permute.xlu0 %2330
    %2332 = vrot.lane.b32.xlu0 %v1401, 48
    %v2333 = vpop.permute.xlu0 %2332
    %2334 = vrot.lane.b32.xlu0 %v1402, 48
    %v2335 = vpop.permute.xlu0 %2334
    %2336 = vrot.lane.b32.xlu0 %v1403, 48
    %v2337 = vpop.permute.xlu0 %2336
    %2338 = vrot.lane.b32.xlu0 %v1404, 48
    %v2339 = vpop.permute.xlu0 %2338
    %2340 = vrot.lane.b32.xlu0 %v1405, 48
    %v2341 = vpop.permute.xlu0 %2340
    %2342 = vrot.lane.b32.xlu0 %v1407, 48
    %v2343 = vpop.permute.xlu0 %2342
    %2344 = vrot.lane.b32.xlu0 %v1408, 48
    %v2345 = vpop.permute.xlu0 %2344
    %2346 = vrot.lane.b32.xlu0 %v1409, 48
    %v2347 = vpop.permute.xlu0 %2346
    %2348 = vrot.lane.b32.xlu0 %v1410, 48
    %v2349 = vpop.permute.xlu0 %2348
    %2350 = vrot.lane.b32.xlu0 %v1411, 48
    %v2351 = vpop.permute.xlu0 %2350
    %2352 = vrot.lane.b32.xlu0 %v1412, 48
    %v2353 = vpop.permute.xlu0 %2352
    %2354 = vrot.lane.b32.xlu0 %v1413, 48
    %v2355 = vpop.permute.xlu0 %2354
    %2356 = vrot.lane.b32.xlu0 %v1414, 48
    %v2357 = vpop.permute.xlu0 %2356
    %2358 = vrot.lane.b32.xlu0 %v1415, 48
    %v2359 = vpop.permute.xlu0 %2358
    %2360 = vrot.lane.b32.xlu0 %v1416, 48
    %v2361 = vpop.permute.xlu0 %2360
    %2362 = vrot.lane.b32.xlu0 %v1417, 48
    %v2363 = vpop.permute.xlu0 %2362
    %2364 = vrot.lane.b32.xlu0 %v1418, 48
    %v2365 = vpop.permute.xlu0 %2364
    %2366 = vrot.lane.b32.xlu0 %v1419, 48
    %v2367 = vpop.permute.xlu0 %2366
    %2368 = vrot.lane.b32.xlu0 %v1420, 48
    %v2369 = vpop.permute.xlu0 %2368
    %2370 = vrot.lane.b32.xlu0 %v1421, 48
    %v2371 = vpop.permute.xlu0 %2370
    %2372 = vrot.lane.b32.xlu0 %v1478, 56
    %v2373 = vpop.permute.xlu0 %2372
    %2374 = vrot.lane.b32.xlu0 %v1490, 56
    %v2375 = vpop.permute.xlu0 %2374
    %2376 = vrot.lane.b32.xlu0 %v1502, 56
    %v2377 = vpop.permute.xlu0 %2376
    %2378 = vrot.lane.b32.xlu0 %v1514, 56
    %v2379 = vpop.permute.xlu0 %2378
    %2380 = vrot.lane.b32.xlu0 %v1526, 56
    %v2381 = vpop.permute.xlu0 %2380
    %2382 = vrot.lane.b32.xlu0 %v1538, 56
    %v2383 = vpop.permute.xlu0 %2382
    %2384 = vrot.lane.b32.xlu0 %v1550, 56
    %v2385 = vpop.permute.xlu0 %2384
    %2386 = vrot.lane.b32.xlu0 %v1562, 56
    %v2387 = vpop.permute.xlu0 %2386
    %2388 = vrot.lane.b32.xlu0 %v1574, 56
    %v2389 = vpop.permute.xlu0 %2388
    %2390 = vrot.lane.b32.xlu0 %v1586, 56
    %v2391 = vpop.permute.xlu0 %2390
    %2392 = vrot.lane.b32.xlu0 %v1598, 56
    %v2393 = vpop.permute.xlu0 %2392
    %2394 = vrot.lane.b32.xlu0 %v1610, 56
    %v2395 = vpop.permute.xlu0 %2394
    %2396 = vrot.lane.b32.xlu0 %v1622, 56
    %v2397 = vpop.permute.xlu0 %2396
    %2398 = vrot.lane.b32.xlu0 %v1634, 56
    %v2399 = vpop.permute.xlu0 %2398
    %2400 = vrot.lane.b32.xlu0 %v2163, 56
    %v2401 = vpop.permute.xlu0 %2400
    %2402 = vrot.lane.b32.xlu0 %v1658, 56
    %v2403 = vpop.permute.xlu0 %2402
    %2404 = vrot.lane.b32.xlu0 %v1670, 56
    %v2405 = vpop.permute.xlu0 %2404
    %2406 = vrot.lane.b32.xlu0 %v1682, 56
    %v2407 = vpop.permute.xlu0 %2406
    %2408 = vrot.lane.b32.xlu0 %v1694, 56
    %v2409 = vpop.permute.xlu0 %2408
    %2410 = vrot.lane.b32.xlu0 %v1706, 56
    %v2411 = vpop.permute.xlu0 %2410
    %2412 = vrot.lane.b32.xlu0 %v1718, 56
    %v2413 = vpop.permute.xlu0 %2412
    %2414 = vrot.lane.b32.xlu0 %v1730, 56
    %v2415 = vpop.permute.xlu0 %2414
    %2416 = vrot.lane.b32.xlu0 %v1742, 56
    %v2417 = vpop.permute.xlu0 %2416
    %2418 = vrot.lane.b32.xlu0 %v1754, 56
    %v2419 = vpop.permute.xlu0 %2418
    %2420 = vrot.lane.b32.xlu0 %v1766, 56
    %v2421 = vpop.permute.xlu0 %2420
    %2422 = vrot.lane.b32.xlu0 %v1778, 56
    %v2423 = vpop.permute.xlu0 %2422
    %2424 = vrot.lane.b32.xlu0 %v1790, 56
    %v2425 = vpop.permute.xlu0 %2424
    %2426 = vrot.lane.b32.xlu0 %v1802, 56
    %v2427 = vpop.permute.xlu0 %2426
    %2428 = vrot.lane.b32.xlu0 %v1814, 56
    %v2429 = vpop.permute.xlu0 %2428
    %2430 = vrot.lane.b32.xlu0 %v2175, 56
    %v2431 = vpop.permute.xlu0 %2430
    %2432 = vrot.lane.b32.xlu0 %v1941, 64
    %v2433 = vpop.permute.xlu0 %2432
    %2434 = vrot.lane.b32.xlu0 %v1944, 64
    %v2435 = vpop.permute.xlu0 %2434
    %2436 = vrot.lane.b32.xlu0 %v1947, 64
    %v2437 = vpop.permute.xlu0 %2436
    %2438 = vrot.lane.b32.xlu0 %v1950, 64
    %v2439 = vpop.permute.xlu0 %2438
    %2440 = vrot.lane.b32.xlu0 %v1953, 64
    %v2441 = vpop.permute.xlu0 %2440
    %2442 = vrot.lane.b32.xlu0 %v1956, 64
    %v2443 = vpop.permute.xlu0 %2442
    %2444 = vrot.lane.b32.xlu0 %v1959, 64
    %v2445 = vpop.permute.xlu0 %2444
    %2446 = vrot.lane.b32.xlu0 %v1962, 64
    %v2447 = vpop.permute.xlu0 %2446
    %2448 = vrot.lane.b32.xlu0 %v1965, 64
    %v2449 = vpop.permute.xlu0 %2448
    %2450 = vrot.lane.b32.xlu0 %v1968, 64
    %v2451 = vpop.permute.xlu0 %2450
    %2452 = vrot.lane.b32.xlu0 %v1971, 64
    %v2453 = vpop.permute.xlu0 %2452
    %2454 = vrot.lane.b32.xlu0 %v1974, 64
    %v2455 = vpop.permute.xlu0 %2454
    %2456 = vrot.lane.b32.xlu0 %v1977, 64
    %v2457 = vpop.permute.xlu0 %2456
    %2458 = vrot.lane.b32.xlu0 %v1980, 64
    %v2459 = vpop.permute.xlu0 %2458
    %2460 = vrot.lane.b32.xlu0 %v2244, 64
    %v2461 = vpop.permute.xlu0 %2460
    %2462 = vrot.lane.b32.xlu0 %v1986, 64
    %v2463 = vpop.permute.xlu0 %2462
    %2464 = vrot.lane.b32.xlu0 %v1989, 64
    %v2465 = vpop.permute.xlu0 %2464
    %2466 = vrot.lane.b32.xlu0 %v1992, 64
    %v2467 = vpop.permute.xlu0 %2466
    %2468 = vrot.lane.b32.xlu0 %v1995, 64
    %v2469 = vpop.permute.xlu0 %2468
    %2470 = vrot.lane.b32.xlu0 %v1998, 64
    %v2471 = vpop.permute.xlu0 %2470
    %2472 = vrot.lane.b32.xlu0 %v2001, 64
    %v2473 = vpop.permute.xlu0 %2472
    %2474 = vrot.lane.b32.xlu0 %v2004, 64
    %v2475 = vpop.permute.xlu0 %2474
    %2476 = vrot.lane.b32.xlu0 %v2007, 64
    %v2477 = vpop.permute.xlu0 %2476
    %2478 = vrot.lane.b32.xlu0 %v2010, 64
    %v2479 = vpop.permute.xlu0 %2478
    %2480 = vrot.lane.b32.xlu0 %v2013, 64
    %v2481 = vpop.permute.xlu0 %2480
    %2482 = vrot.lane.b32.xlu0 %v2016, 64
    %v2483 = vpop.permute.xlu0 %2482
    %2484 = vrot.lane.b32.xlu0 %v2019, 64
    %v2485 = vpop.permute.xlu0 %2484
    %2486 = vrot.lane.b32.xlu0 %v2022, 64
    %v2487 = vpop.permute.xlu0 %2486
    %2488 = vrot.lane.b32.xlu0 %v2025, 64
    %v2489 = vpop.permute.xlu0 %2488
    %2490 = vrot.lane.b32.xlu0 %v2247, 64
    %v2491 = vpop.permute.xlu0 %2490
    %vm2492 = vcmask 64512
    %v2494 = vsel %vm2492, %v1390, %v1816
    %v2496 = vsel %vm2492, %v1391, %v1818
    %v2498 = vsel %vm2492, %v1392, %v1820
    %v2500 = vsel %vm2492, %v1393, %v1822
    %v2502 = vsel %vm2492, %v1394, %v1824
    %v2504 = vsel %vm2492, %v1395, %v1826
    %v2506 = vsel %vm2492, %v1396, %v1828
    %v2508 = vsel %vm2492, %v1397, %v1830
    %v2510 = vsel %vm2492, %v1398, %v1832
    %v2512 = vsel %vm2492, %v1399, %v1834
    %v2514 = vsel %vm2492, %v1400, %v1836
    %v2516 = vsel %vm2492, %v1401, %v1838
    %v2518 = vsel %vm2492, %v1402, %v1840
    %v2520 = vsel %vm2492, %v1403, %v1842
    %v2522 = vsel %vm2492, %v1404, %v1844
    %v2524 = vsel %vm2492, %v1406, %v1846
    %v2526 = vsel %vm2492, %v1407, %v1848
    %v2528 = vsel %vm2492, %v1408, %v1850
    %v2530 = vsel %vm2492, %v1409, %v1852
    %v2532 = vsel %vm2492, %v1410, %v1854
    %v2534 = vsel %vm2492, %v1411, %v1856
    %v2536 = vsel %vm2492, %v1412, %v1858
    %v2538 = vsel %vm2492, %v1413, %v1860
    %v2540 = vsel %vm2492, %v1414, %v1862
    %v2542 = vsel %vm2492, %v1415, %v1864
    %v2544 = vsel %vm2492, %v1416, %v1866
    %v2546 = vsel %vm2492, %v1417, %v1868
    %v2548 = vsel %vm2492, %v1418, %v1870
    %v2550 = vsel %vm2492, %v1419, %v1872
    %v2552 = vsel %vm2492, %v1420, %v1874
    %vm2553 = vcmask 130048
    %v2555 = vsel %vm2553, %v2494, %v2027
    %v2557 = vsel %vm2553, %v2496, %v2029
    %v2559 = vsel %vm2553, %v2498, %v2031
    %v2561 = vsel %vm2553, %v2500, %v2033
    %v2563 = vsel %vm2553, %v2502, %v2035
    %v2565 = vsel %vm2553, %v2504, %v2037
    %v2567 = vsel %vm2553, %v2506, %v2039
    %v2569 = vsel %vm2553, %v2508, %v2041
    %v2571 = vsel %vm2553, %v2510, %v2043
    %v2573 = vsel %vm2553, %v2512, %v2045
    %v2575 = vsel %vm2553, %v2514, %v2047
    %v2577 = vsel %vm2553, %v2516, %v2049
    %v2579 = vsel %vm2553, %v2518, %v2051
    %v2581 = vsel %vm2553, %v2520, %v2053
    %v2583 = vsel %vm2553, %v2522, %v2055
    %v2585 = vsel %vm2553, %v2524, %v2057
    %v2587 = vsel %vm2553, %v2526, %v2059
    %v2589 = vsel %vm2553, %v2528, %v2061
    %v2591 = vsel %vm2553, %v2530, %v2063
    %v2593 = vsel %vm2553, %v2532, %v2065
    %v2595 = vsel %vm2553, %v2534, %v2067
    %v2597 = vsel %vm2553, %v2536, %v2069
    %v2599 = vsel %vm2553, %v2538, %v2071
    %v2601 = vsel %vm2553, %v2540, %v2073
    %v2603 = vsel %vm2553, %v2542, %v2075
    %v2605 = vsel %vm2553, %v2544, %v2077
    %v2607 = vsel %vm2553, %v2546, %v2079
    %v2609 = vsel %vm2553, %v2548, %v2081
    %v2611 = vsel %vm2553, %v2550, %v2083
    %v2613 = vsel %vm2553, %v2552, %v2085
    %vm2614 = vcmask 195584
    %v2616 = vsel %vm2614, %v2555, %v2089
    %v2618 = vsel %vm2614, %v2555, %v2091
    %v2620 = vsel %vm2614, %v2557, %v2093
    %v2622 = vsel %vm2614, %v2559, %v2095
    %v2624 = vsel %vm2614, %v2561, %v2097
    %v2626 = vsel %vm2614, %v2563, %v2099
    %v2628 = vsel %vm2614, %v2565, %v2101
    %v2630 = vsel %vm2614, %v2567, %v2103
    %v2632 = vsel %vm2614, %v2569, %v2105
    %v2634 = vsel %vm2614, %v2571, %v2107
    %v2636 = vsel %vm2614, %v2573, %v2109
    %v2638 = vsel %vm2614, %v2575, %v2111
    %v2640 = vsel %vm2614, %v2577, %v2113
    %v2642 = vsel %vm2614, %v2579, %v2115
    %v2644 = vsel %vm2614, %v2581, %v2117
    %v2646 = vsel %vm2614, %v2583, %v2119
    %v2648 = vsel %vm2614, %v2585, %v2121
    %v2650 = vsel %vm2614, %v2585, %v2123
    %v2652 = vsel %vm2614, %v2587, %v2125
    %v2654 = vsel %vm2614, %v2589, %v2127
    %v2656 = vsel %vm2614, %v2591, %v2129
    %v2658 = vsel %vm2614, %v2593, %v2131
    %v2660 = vsel %vm2614, %v2595, %v2133
    %v2662 = vsel %vm2614, %v2597, %v2135
    %v2664 = vsel %vm2614, %v2599, %v2137
    %v2666 = vsel %vm2614, %v2601, %v2139
    %v2668 = vsel %vm2614, %v2603, %v2141
    %v2670 = vsel %vm2614, %v2605, %v2143
    %v2672 = vsel %vm2614, %v2607, %v2145
    %v2674 = vsel %vm2614, %v2609, %v2147
    %v2676 = vsel %vm2614, %v2611, %v2149
    %v2678 = vsel %vm2614, %v2613, %v2151
    %vm2679 = vcmask 261120
    %v2681 = vsel %vm2679, %v2616, %v2177
    %v2683 = vsel %vm2679, %v2618, %v2179
    %v2685 = vsel %vm2679, %v2620, %v2181
    %v2687 = vsel %vm2679, %v2622, %v2183
    %v2689 = vsel %vm2679, %v2624, %v2185
    %v2691 = vsel %vm2679, %v2626, %v2187
    %v2693 = vsel %vm2679, %v2628, %v2189
    %v2695 = vsel %vm2679, %v2630, %v2191
    %v2697 = vsel %vm2679, %v2632, %v2193
    %v2699 = vsel %vm2679, %v2634, %v2195
    %v2701 = vsel %vm2679, %v2636, %v2197
    %v2703 = vsel %vm2679, %v2638, %v2199
    %v2705 = vsel %vm2679, %v2640, %v2201
    %v2707 = vsel %vm2679, %v2642, %v2203
    %v2709 = vsel %vm2679, %v2644, %v2205
    %v2711 = vsel %vm2679, %v2646, %v2207
    %v2713 = vsel %vm2679, %v2648, %v2209
    %v2715 = vsel %vm2679, %v2650, %v2211
    %v2717 = vsel %vm2679, %v2652, %v2213
    %v2719 = vsel %vm2679, %v2654, %v2215
    %v2721 = vsel %vm2679, %v2656, %v2217
    %v2723 = vsel %vm2679, %v2658, %v2219
    %v2725 = vsel %vm2679, %v2660, %v2221
    %v2727 = vsel %vm2679, %v2662, %v2223
    %v2729 = vsel %vm2679, %v2664, %v2225
    %v2731 = vsel %vm2679, %v2666, %v2227
    %v2733 = vsel %vm2679, %v2668, %v2229
    %v2735 = vsel %vm2679, %v2670, %v2231
    %v2737 = vsel %vm2679, %v2672, %v2233
    %v2739 = vsel %vm2679, %v2674, %v2235
    %v2741 = vsel %vm2679, %v2676, %v2237
    %v2743 = vsel %vm2679, %v2678, %v2239
    %vm2744 = vcmask 326656
    %v2746 = vsel %vm2744, %v2681, %v2249
    %v2748 = vsel %vm2744, %v2683, %v2251
    %v2750 = vsel %vm2744, %v2685, %v2253
    %v2752 = vsel %vm2744, %v2687, %v2255
    %v2754 = vsel %vm2744, %v2689, %v2257
    %v2756 = vsel %vm2744, %v2691, %v2259
    %v2758 = vsel %vm2744, %v2693, %v2261
    %v2760 = vsel %vm2744, %v2695, %v2263
    %v2762 = vsel %vm2744, %v2697, %v2265
    %v2764 = vsel %vm2744, %v2699, %v2267
    %v2766 = vsel %vm2744, %v2701, %v2269
    %v2768 = vsel %vm2744, %v2703, %v2271
    %v2770 = vsel %vm2744, %v2705, %v2273
    %v2772 = vsel %vm2744, %v2707, %v2275
    %v2774 = vsel %vm2744, %v2709, %v2277
    %v2776 = vsel %vm2744, %v2711, %v2279
    %v2778 = vsel %vm2744, %v2713, %v2281
    %v2780 = vsel %vm2744, %v2715, %v2283
    %v2782 = vsel %vm2744, %v2717, %v2285
    %v2784 = vsel %vm2744, %v2719, %v2287
    %v2786 = vsel %vm2744, %v2721, %v2289
    %v2788 = vsel %vm2744, %v2723, %v2291
    %v2790 = vsel %vm2744, %v2725, %v2293
    %v2792 = vsel %vm2744, %v2727, %v2295
    %v2794 = vsel %vm2744, %v2729, %v2297
    %v2796 = vsel %vm2744, %v2731, %v2299
    %v2798 = vsel %vm2744, %v2733, %v2301
    %v2800 = vsel %vm2744, %v2735, %v2303
    %v2802 = vsel %vm2744, %v2737, %v2305
    %v2804 = vsel %vm2744, %v2739, %v2307
    %v2806 = vsel %vm2744, %v2741, %v2309
    %v2808 = vsel %vm2744, %v2743, %v2311
    %vm2809 = vcmask 392192
    %v2811 = vsel %vm2809, %v2746, %v2313
    %v2813 = vsel %vm2809, %v2748, %v2315
    %v2815 = vsel %vm2809, %v2750, %v2317
    %v2817 = vsel %vm2809, %v2752, %v2319
    %v2819 = vsel %vm2809, %v2754, %v2321
    %v2821 = vsel %vm2809, %v2756, %v2323
    %v2823 = vsel %vm2809, %v2758, %v2325
    %v2825 = vsel %vm2809, %v2760, %v2327
    %v2827 = vsel %vm2809, %v2762, %v2329
    %v2829 = vsel %vm2809, %v2764, %v2331
    %v2831 = vsel %vm2809, %v2766, %v2333
    %v2833 = vsel %vm2809, %v2768, %v2335
    %v2835 = vsel %vm2809, %v2770, %v2337
    %v2837 = vsel %vm2809, %v2772, %v2339
    %v2839 = vsel %vm2809, %v2774, %v2341
    %v2840 = vsel %vm2809, %v2776, %v2341
    %v2842 = vsel %vm2809, %v2778, %v2343
    %v2844 = vsel %vm2809, %v2780, %v2345
    %v2846 = vsel %vm2809, %v2782, %v2347
    %v2848 = vsel %vm2809, %v2784, %v2349
    %v2850 = vsel %vm2809, %v2786, %v2351
    %v2852 = vsel %vm2809, %v2788, %v2353
    %v2854 = vsel %vm2809, %v2790, %v2355
    %v2856 = vsel %vm2809, %v2792, %v2357
    %v2858 = vsel %vm2809, %v2794, %v2359
    %v2860 = vsel %vm2809, %v2796, %v2361
    %v2862 = vsel %vm2809, %v2798, %v2363
    %v2864 = vsel %vm2809, %v2800, %v2365
    %v2866 = vsel %vm2809, %v2802, %v2367
    %v2868 = vsel %vm2809, %v2804, %v2369
    %v2870 = vsel %vm2809, %v2806, %v2371
    %v2871 = vsel %vm2809, %v2808, %v2371
    %vm2872 = vcmask 457728
    %v2874 = vsel %vm2872, %v2811, %v2373
    %v2876 = vsel %vm2872, %v2813, %v2375
    %v2878 = vsel %vm2872, %v2815, %v2377
    %v2880 = vsel %vm2872, %v2817, %v2379
    %v2882 = vsel %vm2872, %v2819, %v2381
    %v2884 = vsel %vm2872, %v2821, %v2383
    %v2886 = vsel %vm2872, %v2823, %v2385
    %v2888 = vsel %vm2872, %v2825, %v2387
    %v2890 = vsel %vm2872, %v2827, %v2389
    %v2892 = vsel %vm2872, %v2829, %v2391
    %v2894 = vsel %vm2872, %v2831, %v2393
    %v2896 = vsel %vm2872, %v2833, %v2395
    %v2898 = vsel %vm2872, %v2835, %v2397
    %v2900 = vsel %vm2872, %v2837, %v2399
    %v2902 = vsel %vm2872, %v2839, %v2401
    %v2903 = vsel %vm2872, %v2840, %v2401
    %v2905 = vsel %vm2872, %v2842, %v2403
    %v2907 = vsel %vm2872, %v2844, %v2405
    %v2909 = vsel %vm2872, %v2846, %v2407
    %v2911 = vsel %vm2872, %v2848, %v2409
    %v2913 = vsel %vm2872, %v2850, %v2411
    %v2915 = vsel %vm2872, %v2852, %v2413
    %v2917 = vsel %vm2872, %v2854, %v2415
    %v2919 = vsel %vm2872, %v2856, %v2417
    %v2921 = vsel %vm2872, %v2858, %v2419
    %v2923 = vsel %vm2872, %v2860, %v2421
    %v2925 = vsel %vm2872, %v2862, %v2423
    %v2927 = vsel %vm2872, %v2864, %v2425
    %v2929 = vsel %vm2872, %v2866, %v2427
    %v2931 = vsel %vm2872, %v2868, %v2429
    %v2933 = vsel %vm2872, %v2870, %v2431
    %v2934 = vsel %vm2872, %v2871, %v2431
    %vm2935 = vcmask 523264
    %v2937 = vsel %vm2935, %v2874, %v2433
    %v2939 = vsel %vm2935, %v2876, %v2435
    %v2941 = vsel %vm2935, %v2878, %v2437
    %v2943 = vsel %vm2935, %v2880, %v2439
    %v2945 = vsel %vm2935, %v2882, %v2441
    %v2947 = vsel %vm2935, %v2884, %v2443
    %v2949 = vsel %vm2935, %v2886, %v2445
    %v2951 = vsel %vm2935, %v2888, %v2447
    %v2953 = vsel %vm2935, %v2890, %v2449
    %v2955 = vsel %vm2935, %v2892, %v2451
    %v2957 = vsel %vm2935, %v2894, %v2453
    %v2959 = vsel %vm2935, %v2896, %v2455
    %v2961 = vsel %vm2935, %v2898, %v2457
    %v2963 = vsel %vm2935, %v2900, %v2459
    %v2965 = vsel %vm2935, %v2902, %v2461
    %v2966 = vsel %vm2935, %v2903, %v2461
    %v2968 = vsel %vm2935, %v2905, %v2463
    %v2970 = vsel %vm2935, %v2907, %v2465
    %v2972 = vsel %vm2935, %v2909, %v2467
    %v2974 = vsel %vm2935, %v2911, %v2469
    %v2976 = vsel %vm2935, %v2913, %v2471
    %v2978 = vsel %vm2935, %v2915, %v2473
    %v2980 = vsel %vm2935, %v2917, %v2475
    %v2982 = vsel %vm2935, %v2919, %v2477
    %v2984 = vsel %vm2935, %v2921, %v2479
    %v2986 = vsel %vm2935, %v2923, %v2481
    %v2988 = vsel %vm2935, %v2925, %v2483
    %v2990 = vsel %vm2935, %v2927, %v2485
    %v2992 = vsel %vm2935, %v2929, %v2487
    %v2994 = vsel %vm2935, %v2931, %v2489
    %v2996 = vsel %vm2935, %v2933, %v2491
    %v2997 = vsel %vm2935, %v2934, %v2491
    %v2998 = vld [vmem:[%s3] sm:$0xf]
    %v2999 = vld [vmem:[%s3 + $0x4] sm:$0xf]
    %v3000 = vld [vmem:[%s3 + $0x8] sm:$0xf]
    %v3001 = vld [vmem:[%s3 + $0xc] sm:$0xf]
    %v3002 = vld [vmem:[%s3 + $0x10] sm:$0xf]
    %v3003 = vld [vmem:[%s3 + $0x14] sm:$0xf]
    %v3004 = vld [vmem:[%s3 + $0x18] sm:$0xf]
    %v3005 = vld [vmem:[%s3 + $0x1c] sm:$0xf]
    %v3006 = vld [vmem:[%s3 + $0x20] sm:$0xf]
    %v3007 = vld [vmem:[%s4] sm:$0x1]
    %v3009 = vlaneseq
    %v3010 = vshrl.u32 %v3009, 7
    %v3011 = vsub.s32 0, %v3010
    %v3012 = vrot.slane %v3007, %v3011
    %v3023 = vunpack.c.l.b16 %v2998
    %v3024 = vunpack.c.l.b16 %v2999
    %v3025 = vunpack.c.l.b16 %v3000
    %v3026 = vunpack.c.l.b16 %v3001
    %v3027 = vunpack.c.l.b16 %v3002
    %v3028 = vunpack.c.l.b16 %v3003
    %v3029 = vunpack.c.l.b16 %v3004
    %v3030 = vunpack.c.l.b16 %v3005
    %v3031 = vunpack.c.l.b16 %v3006
    %v3032 = vpack.c.b16 %v3024, %v3023
    %v3033 = vpack.c.b16 %v3026, %v3025
    %v3034 = vpack.c.b16 %v3028, %v3027
    %v3035 = vpack.c.b16 %v3030, %v3029
    %v3036 = vpack.c.b16 %v3031, %v3031
    %vm3041 = vcmask 588800
    %v3042 = vsel %vm3041, %v2937, 0
    %v3044 = vsel %vm3041, %v2939, 0
    %v3046 = vsel %vm3041, %v2941, 0
    %v3048 = vsel %vm3041, %v2943, 0
    %v3050 = vsel %vm3041, %v2945, 0
    %v3052 = vsel %vm3041, %v2947, 0
    %v3054 = vsel %vm3041, %v2949, 0
    %v3056 = vsel %vm3041, %v2951, 0
    %v3058 = vsel %vm3041, %v2953, 0
    %v3060 = vsel %vm3041, %v2955, 0
    %v3062 = vsel %vm3041, %v2957, 0
    %v3064 = vsel %vm3041, %v2959, 0
    %v3066 = vsel %vm3041, %v2961, 0
    %v3068 = vsel %vm3041, %v2963, 0
    %v3070 = vsel %vm3041, %v2965, 0
    %v3072 = vsel %vm3041, %v2966, 0
    %v3074 = vsel %vm3041, %v2968, 0
    %v3076 = vsel %vm3041, %v2970, 0
    %v3078 = vsel %vm3041, %v2972, 0
    %v3080 = vsel %vm3041, %v2974, 0
    %v3082 = vsel %vm3041, %v2976, 0
    %v3084 = vsel %vm3041, %v2978, 0
    %v3086 = vsel %vm3041, %v2980, 0
    %v3088 = vsel %vm3041, %v2982, 0
    %v3090 = vsel %vm3041, %v2984, 0
    %v3092 = vsel %vm3041, %v2986, 0
    %v3094 = vsel %vm3041, %v2988, 0
    %v3096 = vsel %vm3041, %v2990, 0
    %v3098 = vsel %vm3041, %v2992, 0
    %v3100 = vsel %vm3041, %v2994, 0
    %v3102 = vsel %vm3041, %v2996, 0
    %v3104 = vsel %vm3041, %v2997, 0
    %vm3106 = vcmask 1043456
    %v3108 = vsel %vm3106, %v3036, 0
    %3110 = vmatprep.subr.bf16.mxu0 0
    %3111 = vmatpush1.bf16.msra.mxu0 0
    %3112 = vmatprep.subr.bf16.mxu0 0
    %3113 = vmatpush1.bf16.msra.mxu0 0
    %3114 = vmatprep.subr.bf16.mxu0 0
    %3115 = vmatpush1.bf16.msra.mxu0 0
    %3116 = vmatprep.subr.bf16.mxu0 0
    %3117 = vmatpush1.bf16.msra.mxu0 %v3108
    %3118 = vmatprep.subr.bf16.mxu0 0
    %3119 = vmatpush1.bf16.msra.mxu0 %v3035
    %3120 = vmatprep.subr.bf16.mxu0 0
    %3121 = vmatpush1.bf16.msra.mxu0 %v3034
    %3122 = vmatprep.subr.bf16.mxu0 0
    %3123 = vmatpush1.bf16.msra.mxu0 %v3033
    %3124 = vmatprep.subr.bf16.mxu0 0
    %3125 = vmatpush1.bf16.msra.mxu0 %v3032
    %3126 = vmatprep.subr.bf16.mxu0 0
    %3127 = vmatpush2.bf16.msra.mxu0 0
    %3128 = vmatprep.subr.bf16.mxu0 0
    %3129 = vmatpush2.bf16.msra.mxu0 0
    %3130 = vmatprep.subr.bf16.mxu0 0
    %3131 = vmatpush2.bf16.msra.mxu0 0
    %3132 = vmatprep.subr.bf16.mxu0 0
    %3133 = vmatpush2.bf16.msra.mxu0 0
    %3134 = vmatprep.subr.bf16.mxu0 0
    %3135 = vmatpush2.bf16.msra.mxu0 0
    %3136 = vmatprep.subr.bf16.mxu0 0
    %3137 = vmatpush2.bf16.msra.mxu0 0
    %3138 = vmatprep.subr.bf16.mxu0 0
    %3139 = vmatpush2.bf16.msra.mxu0 0
    %3140 = vmatprep.subr.bf16.mxu0 0
    %3141 = vmatpush2.bf16.msra.mxu0 0
    %3142 = vmatprep.mubr.bf16.mxu0 0
    %3143 = vmatmul.mubr.bf16.gmra.mxu0 %v3042
    %v3144 = vpop.f32.mrf.mxu0
    %v3145 = vadd.f32 %v3012, %v3144
    %v3146 = vpop.f32.mrf.mxu0
    %v3147 = vpop.f32.mrf.mxu0
    %v3148 = vadd.f32 %v3012, %v3147
    %v3149 = vpop.f32.mrf.mxu0
    %3150 = vmatprep.mubr.bf16.mxu0 0
    %3151 = vmatmul.mubr.bf16.gmra.mxu0 %v3044
    %v3152 = vpop.f32.mrf.mxu0
    %v3153 = vadd.f32 %v3012, %v3152
    %v3154 = vpop.f32.mrf.mxu0
    %v3155 = vpop.f32.mrf.mxu0
    %v3156 = vadd.f32 %v3012, %v3155
    %v3157 = vpop.f32.mrf.mxu0
    %3158 = vmatprep.mubr.bf16.mxu0 0
    %3159 = vmatmul.mubr.bf16.gmra.mxu0 %v3046
    %v3160 = vpop.f32.mrf.mxu0
    %v3161 = vadd.f32 %v3012, %v3160
    %v3162 = vpop.f32.mrf.mxu0
    %v3163 = vpop.f32.mrf.mxu0
    %v3164 = vadd.f32 %v3012, %v3163
    %v3165 = vpop.f32.mrf.mxu0
    %3166 = vmatprep.mubr.bf16.mxu0 0
    %3167 = vmatmul.mubr.bf16.gmra.mxu0 %v3048
    %v3168 = vpop.f32.mrf.mxu0
    %v3169 = vadd.f32 %v3012, %v3168
    %v3170 = vpop.f32.mrf.mxu0
    %v3171 = vpop.f32.mrf.mxu0
    %v3172 = vadd.f32 %v3012, %v3171
    %v3173 = vpop.f32.mrf.mxu0
    %3174 = vmatprep.mubr.bf16.mxu0 0
    %3175 = vmatmul.mubr.bf16.gmra.mxu0 %v3050
    %v3176 = vpop.f32.mrf.mxu0
    %v3177 = vadd.f32 %v3012, %v3176
    %v3178 = vpop.f32.mrf.mxu0
    %v3179 = vpop.f32.mrf.mxu0
    %v3180 = vadd.f32 %v3012, %v3179
    %v3181 = vpop.f32.mrf.mxu0
    %3182 = vmatprep.mubr.bf16.mxu0 0
    %3183 = vmatmul.mubr.bf16.gmra.mxu0 %v3052
    %v3184 = vpop.f32.mrf.mxu0
    %v3185 = vadd.f32 %v3012, %v3184
    %v3186 = vpop.f32.mrf.mxu0
    %v3187 = vpop.f32.mrf.mxu0
    %v3188 = vadd.f32 %v3012, %v3187
    %v3189 = vpop.f32.mrf.mxu0
    %3190 = vmatprep.mubr.bf16.mxu0 0
    %3191 = vmatmul.mubr.bf16.gmra.mxu0 %v3054
    %v3192 = vpop.f32.mrf.mxu0
    %v3193 = vadd.f32 %v3012, %v3192
    %v3194 = vpop.f32.mrf.mxu0
    %v3195 = vpop.f32.mrf.mxu0
    %v3196 = vadd.f32 %v3012, %v3195
    %v3197 = vpop.f32.mrf.mxu0
    %3198 = vmatprep.mubr.bf16.mxu0 0
    %3199 = vmatmul.mubr.bf16.gmra.mxu0 %v3056
    %v3200 = vpop.f32.mrf.mxu0
    %v3201 = vadd.f32 %v3012, %v3200
    %v3202 = vpop.f32.mrf.mxu0
    %v3203 = vpop.f32.mrf.mxu0
    %v3204 = vadd.f32 %v3012, %v3203
    %v3205 = vpop.f32.mrf.mxu0
    %3206 = vmatprep.mubr.bf16.mxu0 0
    %3207 = vmatmul.mubr.bf16.gmra.mxu0 %v3058
    %v3208 = vpop.f32.mrf.mxu0
    %v3209 = vadd.f32 %v3012, %v3208
    %v3210 = vpop.f32.mrf.mxu0
    %v3211 = vpop.f32.mrf.mxu0
    %v3212 = vadd.f32 %v3012, %v3211
    %v3213 = vpop.f32.mrf.mxu0
    %3214 = vmatprep.mubr.bf16.mxu0 0
    %3215 = vmatmul.mubr.bf16.gmra.mxu0 %v3060
    %v3216 = vpop.f32.mrf.mxu0
    %v3217 = vadd.f32 %v3012, %v3216
    %v3218 = vpop.f32.mrf.mxu0
    %v3219 = vpop.f32.mrf.mxu0
    %v3220 = vadd.f32 %v3012, %v3219
    %v3221 = vpop.f32.mrf.mxu0
    %3222 = vmatprep.mubr.bf16.mxu0 0
    %3223 = vmatmul.mubr.bf16.gmra.mxu0 %v3062
    %v3224 = vpop.f32.mrf.mxu0
    %v3225 = vadd.f32 %v3012, %v3224
    %v3226 = vpop.f32.mrf.mxu0
    %v3227 = vpop.f32.mrf.mxu0
    %v3228 = vadd.f32 %v3012, %v3227
    %v3229 = vpop.f32.mrf.mxu0
    %3230 = vmatprep.mubr.bf16.mxu0 0
    %3231 = vmatmul.mubr.bf16.gmra.mxu0 %v3064
    %v3232 = vpop.f32.mrf.mxu0
    %v3233 = vadd.f32 %v3012, %v3232
    %v3234 = vpop.f32.mrf.mxu0
    %v3235 = vpop.f32.mrf.mxu0
    %v3236 = vadd.f32 %v3012, %v3235
    %v3237 = vpop.f32.mrf.mxu0
    %3238 = vmatprep.mubr.bf16.mxu0 0
    %3239 = vmatmul.mubr.bf16.gmra.mxu0 %v3066
    %v3240 = vpop.f32.mrf.mxu0
    %v3241 = vadd.f32 %v3012, %v3240
    %v3242 = vpop.f32.mrf.mxu0
    %v3243 = vpop.f32.mrf.mxu0
    %v3244 = vadd.f32 %v3012, %v3243
    %v3245 = vpop.f32.mrf.mxu0
    %3246 = vmatprep.mubr.bf16.mxu0 0
    %3247 = vmatmul.mubr.bf16.gmra.mxu0 %v3068
    %v3248 = vpop.f32.mrf.mxu0
    %v3249 = vadd.f32 %v3012, %v3248
    %v3250 = vpop.f32.mrf.mxu0
    %v3251 = vpop.f32.mrf.mxu0
    %v3252 = vadd.f32 %v3012, %v3251
    %v3253 = vpop.f32.mrf.mxu0
    %3254 = vmatprep.mubr.bf16.mxu0 0
    %3255 = vmatmul.mubr.bf16.gmra.mxu0 %v3070
    %v3256 = vpop.f32.mrf.mxu0
    %v3257 = vadd.f32 %v3012, %v3256
    %v3258 = vpop.f32.mrf.mxu0
    %v3259 = vpop.f32.mrf.mxu0
    %v3260 = vadd.f32 %v3012, %v3259
    %v3261 = vpop.f32.mrf.mxu0
    %3262 = vmatprep.mubr.bf16.mxu0 0
    %3263 = vmatmul.mubr.bf16.gmra.mxu0 %v3072
    %v3264 = vpop.f32.mrf.mxu0
    %v3265 = vadd.f32 %v3012, %v3264
    %v3266 = vpop.f32.mrf.mxu0
    %v3267 = vpop.f32.mrf.mxu0
    %v3268 = vadd.f32 %v3012, %v3267
    %v3269 = vpop.f32.mrf.mxu0
    %3270 = vmatprep.mubr.bf16.mxu0 0
    %3271 = vmatmul.mubr.bf16.gmra.mxu0 %v3074
    %v3272 = vpop.f32.mrf.mxu0
    %v3273 = vadd.f32 %v3012, %v3272
    %v3274 = vpop.f32.mrf.mxu0
    %v3275 = vpop.f32.mrf.mxu0
    %v3276 = vadd.f32 %v3012, %v3275
    %v3277 = vpop.f32.mrf.mxu0
    %3278 = vmatprep.mubr.bf16.mxu0 0
    %3279 = vmatmul.mubr.bf16.gmra.mxu0 %v3076
    %v3280 = vpop.f32.mrf.mxu0
    %v3281 = vadd.f32 %v3012, %v3280
    %v3282 = vpop.f32.mrf.mxu0
    %v3283 = vpop.f32.mrf.mxu0
    %v3284 = vadd.f32 %v3012, %v3283
    %v3285 = vpop.f32.mrf.mxu0
    %3286 = vmatprep.mubr.bf16.mxu0 0
    %3287 = vmatmul.mubr.bf16.gmra.mxu0 %v3078
    %v3288 = vpop.f32.mrf.mxu0
    %v3289 = vadd.f32 %v3012, %v3288
    %v3290 = vpop.f32.mrf.mxu0
    %v3291 = vpop.f32.mrf.mxu0
    %v3292 = vadd.f32 %v3012, %v3291
    %v3293 = vpop.f32.mrf.mxu0
    %3294 = vmatprep.mubr.bf16.mxu0 0
    %3295 = vmatmul.mubr.bf16.gmra.mxu0 %v3080
    %v3296 = vpop.f32.mrf.mxu0
    %v3297 = vadd.f32 %v3012, %v3296
    %v3298 = vpop.f32.mrf.mxu0
    %v3299 = vpop.f32.mrf.mxu0
    %v3300 = vadd.f32 %v3012, %v3299
    %v3301 = vpop.f32.mrf.mxu0
    %3302 = vmatprep.mubr.bf16.mxu0 0
    %3303 = vmatmul.mubr.bf16.gmra.mxu0 %v3082
    %v3304 = vpop.f32.mrf.mxu0
    %v3305 = vadd.f32 %v3012, %v3304
    %v3306 = vpop.f32.mrf.mxu0
    %v3307 = vpop.f32.mrf.mxu0
    %v3308 = vadd.f32 %v3012, %v3307
    %v3309 = vpop.f32.mrf.mxu0
    %3310 = vmatprep.mubr.bf16.mxu0 0
    %3311 = vmatmul.mubr.bf16.gmra.mxu0 %v3084
    %v3312 = vpop.f32.mrf.mxu0
    %v3313 = vadd.f32 %v3012, %v3312
    %v3314 = vpop.f32.mrf.mxu0
    %v3315 = vpop.f32.mrf.mxu0
    %v3316 = vadd.f32 %v3012, %v3315
    %v3317 = vpop.f32.mrf.mxu0
    %3318 = vmatprep.mubr.bf16.mxu0 0
    %3319 = vmatmul.mubr.bf16.gmra.mxu0 %v3086
    %v3320 = vpop.f32.mrf.mxu0
    %v3321 = vadd.f32 %v3012, %v3320
    %v3322 = vpop.f32.mrf.mxu0
    %v3323 = vpop.f32.mrf.mxu0
    %v3324 = vadd.f32 %v3012, %v3323
    %v3325 = vpop.f32.mrf.mxu0
    %3326 = vmatprep.mubr.bf16.mxu0 0
    %3327 = vmatmul.mubr.bf16.gmra.mxu0 %v3088
    %v3328 = vpop.f32.mrf.mxu0
    %v3329 = vadd.f32 %v3012, %v3328
    %v3330 = vpop.f32.mrf.mxu0
    %v3331 = vpop.f32.mrf.mxu0
    %v3332 = vadd.f32 %v3012, %v3331
    %v3333 = vpop.f32.mrf.mxu0
    %3334 = vmatprep.mubr.bf16.mxu0 0
    %3335 = vmatmul.mubr.bf16.gmra.mxu0 %v3090
    %v3336 = vpop.f32.mrf.mxu0
    %v3337 = vadd.f32 %v3012, %v3336
    %v3338 = vpop.f32.mrf.mxu0
    %v3339 = vpop.f32.mrf.mxu0
    %v3340 = vadd.f32 %v3012, %v3339
    %v3341 = vpop.f32.mrf.mxu0
    %3342 = vmatprep.mubr.bf16.mxu0 0
    %3343 = vmatmul.mubr.bf16.gmra.mxu0 %v3092
    %v3344 = vpop.f32.mrf.mxu0
    %v3345 = vadd.f32 %v3012, %v3344
    %v3346 = vpop.f32.mrf.mxu0
    %v3347 = vpop.f32.mrf.mxu0
    %v3348 = vadd.f32 %v3012, %v3347
    %v3349 = vpop.f32.mrf.mxu0
    %3350 = vmatprep.mubr.bf16.mxu0 0
    %3351 = vmatmul.mubr.bf16.gmra.mxu0 %v3094
    %v3352 = vpop.f32.mrf.mxu0
    %v3353 = vadd.f32 %v3012, %v3352
    %v3354 = vpop.f32.mrf.mxu0
    %v3355 = vpop.f32.mrf.mxu0
    %v3356 = vadd.f32 %v3012, %v3355
    %v3357 = vpop.f32.mrf.mxu0
    %3358 = vmatprep.mubr.bf16.mxu0 0
    %3359 = vmatmul.mubr.bf16.gmra.mxu0 %v3096
    %v3360 = vpop.f32.mrf.mxu0
    %v3361 = vadd.f32 %v3012, %v3360
    %v3362 = vpop.f32.mrf.mxu0
    %v3363 = vpop.f32.mrf.mxu0
    %v3364 = vadd.f32 %v3012, %v3363
    %v3365 = vpop.f32.mrf.mxu0
    %3366 = vmatprep.mubr.bf16.mxu0 0
    %3367 = vmatmul.mubr.bf16.gmra.mxu0 %v3098
    %v3368 = vpop.f32.mrf.mxu0
    %v3369 = vadd.f32 %v3012, %v3368
    %v3370 = vpop.f32.mrf.mxu0
    %v3371 = vpop.f32.mrf.mxu0
    %v3372 = vadd.f32 %v3012, %v3371
    %v3373 = vpop.f32.mrf.mxu0
    %3374 = vmatprep.mubr.bf16.mxu0 0
    %3375 = vmatmul.mubr.bf16.gmra.mxu0 %v3100
    %v3376 = vpop.f32.mrf.mxu0
    %v3377 = vadd.f32 %v3012, %v3376
    %v3378 = vpop.f32.mrf.mxu0
    %v3379 = vpop.f32.mrf.mxu0
    %v3380 = vadd.f32 %v3012, %v3379
    %v3381 = vpop.f32.mrf.mxu0
    %3382 = vmatprep.mubr.bf16.mxu0 0
    %3383 = vmatmul.mubr.bf16.gmra.mxu0 %v3102
    %v3384 = vpop.f32.mrf.mxu0
    %v3385 = vadd.f32 %v3012, %v3384
    %v3386 = vpop.f32.mrf.mxu0
    %v3387 = vpop.f32.mrf.mxu0
    %v3388 = vadd.f32 %v3012, %v3387
    %v3389 = vpop.f32.mrf.mxu0
    %3390 = vmatprep.mubr.bf16.mxu0 0
    %3391 = vmatmul.mubr.bf16.gmra.mxu0 %v3104
    %v3392 = vpop.f32.mrf.mxu0
    %v3393 = vadd.f32 %v3012, %v3392
    %v3394 = vpop.f32.mrf.mxu0
    %v3395 = vpop.f32.mrf.mxu0
    %v3396 = vadd.f32 %v3012, %v3395
    %v3397 = vpop.f32.mrf.mxu0
    %3398 = vdwg.mxu0
    %3399 = vst.msk [vmem:[%s5] sm:$0xff] %vm2492, %v3145
    %3400 = vst.msk [vmem:[%s5 + $0x8] sm:$0xff] %vm2492, %v3148
    %3401 = vst.msk [vmem:[%s5 + $0x10] sm:$0xff] %vm2492, %v3153
    %3402 = vst.msk [vmem:[%s5 + $0x18] sm:$0xff] %vm2492, %v3156
    %3403 = vst.msk [vmem:[%s5 + $0x20] sm:$0xff] %vm2492, %v3161
    %3404 = vst.msk [vmem:[%s5 + $0x28] sm:$0xff] %vm2492, %v3164
    %3405 = vst.msk [vmem:[%s5 + $0x30] sm:$0xff] %vm2492, %v3169
    %3406 = vst.msk [vmem:[%s5 + $0x38] sm:$0xff] %vm2492, %v3172
    %3407 = vst.msk [vmem:[%s5 + $0x40] sm:$0xff] %vm2492, %v3177
    %3408 = vst.msk [vmem:[%s5 + $0x48] sm:$0xff] %vm2492, %v3180
    %3409 = vst.msk [vmem:[%s5 + $0x50] sm:$0xff] %vm2492, %v3185
    %3410 = vst.msk [vmem:[%s5 + $0x58] sm:$0xff] %vm2492, %v3188
    %3411 = vst.msk [vmem:[%s5 + $0x60] sm:$0xff] %vm2492, %v3193
    %3412 = vst.msk [vmem:[%s5 + $0x68] sm:$0xff] %vm2492, %v3196
    %3413 = vst.msk [vmem:[%s5 + $0x70] sm:$0xff] %vm2492, %v3201
    %3414 = vst.msk [vmem:[%s5 + $0x78] sm:$0xff] %vm2492, %v3204
    %3415 = vst.msk [vmem:[%s5 + $0x80] sm:$0xff] %vm2492, %v3209
    %3416 = vst.msk [vmem:[%s5 + $0x88] sm:$0xff] %vm2492, %v3212
    %3417 = vst.msk [vmem:[%s5 + $0x90] sm:$0xff] %vm2492, %v3217
    %3418 = vst.msk [vmem:[%s5 + $0x98] sm:$0xff] %vm2492, %v3220
    %3419 = vst.msk [vmem:[%s5 + $0xa0] sm:$0xff] %vm2492, %v3225
    %3420 = vst.msk [vmem:[%s5 + $0xa8] sm:$0xff] %vm2492, %v3228
    %3421 = vst.msk [vmem:[%s5 + $0xb0] sm:$0xff] %vm2492, %v3233
    %3422 = vst.msk [vmem:[%s5 + $0xb8] sm:$0xff] %vm2492, %v3236
    %3423 = vst.msk [vmem:[%s5 + $0xc0] sm:$0xff] %vm2492, %v3241
    %3424 = vst.msk [vmem:[%s5 + $0xc8] sm:$0xff] %vm2492, %v3244
    %3425 = vst.msk [vmem:[%s5 + $0xd0] sm:$0xff] %vm2492, %v3249
    %3426 = vst.msk [vmem:[%s5 + $0xd8] sm:$0xff] %vm2492, %v3252
    %3427 = vst.msk [vmem:[%s5 + $0xe0] sm:$0xff] %vm2492, %v3257
    %3428 = vst.msk [vmem:[%s5 + $0xe8] sm:$0xff] %vm2492, %v3260
    %3429 = vst.msk [vmem:[%s5 + $0xf0] sm:$0xff] %vm2492, %v3265
    %3430 = vst.msk [vmem:[%s5 + $0xf8] sm:$0xff] %vm2492, %v3268
    %3431 = vst.msk [vmem:[%s5 + $0x100] sm:$0xff] %vm2492, %v3273
    %3432 = vst.msk [vmem:[%s5 + $0x108] sm:$0xff] %vm2492, %v3276
    %3433 = vst.msk [vmem:[%s5 + $0x110] sm:$0xff] %vm2492, %v3281
    %3434 = vst.msk [vmem:[%s5 + $0x118] sm:$0xff] %vm2492, %v3284
    %3435 = vst.msk [vmem:[%s5 + $0x120] sm:$0xff] %vm2492, %v3289
    %3436 = vst.msk [vmem:[%s5 + $0x128] sm:$0xff] %vm2492, %v3292
    %3437 = vst.msk [vmem:[%s5 + $0x130] sm:$0xff] %vm2492, %v3297
    %3438 = vst.msk [vmem:[%s5 + $0x138] sm:$0xff] %vm2492, %v3300
    %3439 = vst.msk [vmem:[%s5 + $0x140] sm:$0xff] %vm2492, %v3305
    %3440 = vst.msk [vmem:[%s5 + $0x148] sm:$0xff] %vm2492, %v3308
    %3441 = vst.msk [vmem:[%s5 + $0x150] sm:$0xff] %vm2492, %v3313
    %3442 = vst.msk [vmem:[%s5 + $0x158] sm:$0xff] %vm2492, %v3316
    %3443 = vst.msk [vmem:[%s5 + $0x160] sm:$0xff] %vm2492, %v3321
    %3444 = vst.msk [vmem:[%s5 + $0x168] sm:$0xff] %vm2492, %v3324
    %3445 = vst.msk [vmem:[%s5 + $0x170] sm:$0xff] %vm2492, %v3329
    %3446 = vst.msk [vmem:[%s5 + $0x178] sm:$0xff] %vm2492, %v3332
    %3447 = vst.msk [vmem:[%s5 + $0x180] sm:$0xff] %vm2492, %v3337
    %3448 = vst.msk [vmem:[%s5 + $0x188] sm:$0xff] %vm2492, %v3340
    %3449 = vst.msk [vmem:[%s5 + $0x190] sm:$0xff] %vm2492, %v3345
    %3450 = vst.msk [vmem:[%s5 + $0x198] sm:$0xff] %vm2492, %v3348
    %3451 = vst.msk [vmem:[%s5 + $0x1a0] sm:$0xff] %vm2492, %v3353
    %3452 = vst.msk [vmem:[%s5 + $0x1a8] sm:$0xff] %vm2492, %v3356
    %3453 = vst.msk [vmem:[%s5 + $0x1b0] sm:$0xff] %vm2492, %v3361
    %3454 = vst.msk [vmem:[%s5 + $0x1b8] sm:$0xff] %vm2492, %v3364
    %3455 = vst.msk [vmem:[%s5 + $0x1c0] sm:$0xff] %vm2492, %v3369
    %3456 = vst.msk [vmem:[%s5 + $0x1c8] sm:$0xff] %vm2492, %v3372
    %3457 = vst.msk [vmem:[%s5 + $0x1d0] sm:$0xff] %vm2492, %v3377
    %3458 = vst.msk [vmem:[%s5 + $0x1d8] sm:$0xff] %vm2492, %v3380
    %3459 = vst.msk [vmem:[%s5 + $0x1e0] sm:$0xff] %vm2492, %v3385
    %3460 = vst.msk [vmem:[%s5 + $0x1e8] sm:$0xff] %vm2492, %v3388
    %3461 = vst.msk [vmem:[%s5 + $0x1f0] sm:$0xff] %vm2492, %v3393
    %3462 = vst.msk [vmem:[%s5 + $0x1f8] sm:$0xff] %vm2492, %v3396
    // Predicated region
    $region26: #{tpu_custom_call.1} parent=1 // pred_check
      _
    $region27: #{tpu_custom_call.1} parent=1 // pred_check_branch
      %3464 = sbr.rel (0) target = $region29
    $region28: #{tpu_custom_call.1} parent=1 // pred_region
      _
    $region29: #{tpu_custom_call.1} parent=1 // pred_fallthru
      _
    // Predicated region
    $region30: #{tpu_custom_call.1} parent=1 // pred_check
      _
    $region31: #{tpu_custom_call.1} parent=1 // pred_check_branch
      %3466 = sbr.rel (0) target = $region33
    $region32: #{tpu_custom_call.1} parent=1 // pred_region
      _
    $region33: #{tpu_custom_call.1} parent=1 // pred_fallthru
      _
    %3467 = vsyncpa [#allocation3], 1

</llo_original>
